<compile_context>
chip_gen: v7x
topology: tpu7x:2x2x1
jax: 0.10.0
libtpu: 0.0.40
codegen_flags: <defaults>
</compile_context>

<pallas_src>
import jax
import jax.numpy as jnp
from jax import lax
from jax.experimental import pallas as pl
from jax.experimental.pallas import tpu as pltpu


def _fused_attn_kernel(z1_ref, z2_ref, wq_ref, bq_ref, wk_ref, bk_ref,
                       wv_ref, bv_ref, o_ref,
                       q_scr, m_scr, l_scr, acc_scr):
    ki = pl.program_id(2)

    @pl.when(ki == 0)
    def _init():
        # Project this query tile once per (b, qi).  (C, tq) -> (tq, C)
        # transpose runs on the XLU; matmul on the MXU in compute dtype.
        # Wq / bq are already pre-scaled by C^-0.5 in the wrapper.
        z1t = jnp.transpose(z1_ref[0])                                   # (tq, C)
        q = (jnp.dot(z1t.astype(q_scr.dtype), wq_ref[...],
                     preferred_element_type=jnp.float32) + bq_ref[...])
        q_scr[...] = q.astype(q_scr.dtype)
        m_scr[...] = jnp.full_like(m_scr, -jnp.inf)
        l_scr[...] = jnp.zeros_like(l_scr)
        acc_scr[...] = jnp.zeros_like(acc_scr)

    # Project the K / V tile for this kv step: z2 tile (C, tk) -> (tk, C).
    z2t = jnp.transpose(z2_ref[0]).astype(q_scr.dtype)                   # (tk, C)
    k = (jnp.dot(z2t, wk_ref[...], preferred_element_type=jnp.float32)
         + bk_ref[...]).astype(q_scr.dtype)
    v = (jnp.dot(z2t, wv_ref[...], preferred_element_type=jnp.float32)
         + bv_ref[...]).astype(q_scr.dtype)

    # Scores (tq, tk): contract dim 1 of q with dim 1 of k (no explicit k.T).
    s = lax.dot_general(q_scr[...], k, (((1,), (1,)), ((), ())),
                        preferred_element_type=jnp.float32)

    # Online softmax with UNNORMALIZED probabilities (normalization deferred).
    m_prev = m_scr[...]
    m_new = jnp.maximum(m_prev, jnp.max(s, axis=-1, keepdims=True))
    alpha = jnp.exp(m_prev - m_new)
    p = jnp.exp(s - m_new)
    l_scr[...] = alpha * l_scr[...] + jnp.sum(p, axis=-1, keepdims=True)
    acc_scr[...] = alpha * acc_scr[...] + jnp.dot(
        p.astype(q_scr.dtype), v, preferred_element_type=jnp.float32)
    m_scr[...] = m_new

    @pl.when(ki == pl.num_programs(2) - 1)
    def _finalize():
        # Deferred normalization: one (tq, C) multiply; divide goes to the EUP.
        o_ref[0] = (acc_scr[...] * pl.reciprocal(l_scr[...], approx=True)
                    ).astype(o_ref.dtype)


def _pick_seq_tile(length, max_tile=512):
    # Last-dim blocks must be a multiple of 128 (lane width) or the full axis.
    for t in (max_tile, 256, 128):
        if length % t == 0:
            return t
    return length


def cross_image_attention(z1_nchw, z2_nchw, params, *,
                          compute_dtype=jnp.bfloat16):
    """z1_nchw, z2_nchw: (B, C, H, W) float32.  Returns (B, L, C) float32."""
    B, C, H, W = z1_nchw.shape
    L = H * W

    # Keep the (B, C, L) layout: torch's flatten(2) only — the permute(0, 2, 1)
    # happens per-tile in-kernel (saves a full HBM read+write pass per input).
    z1 = z1_nchw.reshape(B, C, L)
    z2 = z2_nchw.reshape(B, C, L)

    # Fold the C^-0.5 attention scale into the Q projection (free), split the
    # fused kv_proj weight into separate K / V weights ONCE here (avoids a
    # non-lane-aligned slice inside the kernel), cast MXU operands to
    # compute_dtype (biases added in f32 after the f32-accumulated matmul).
    scale = jnp.float32(C) ** jnp.float32(-0.5)
    wq = (params["wq"] * scale).astype(compute_dtype)          # (C, C)
    bq = (params["bq"] * scale).reshape(1, C).astype(jnp.float32)
    wk = params["wkv"][:, :C].astype(compute_dtype)            # (C, C)
    wv = params["wkv"][:, C:].astype(compute_dtype)            # (C, C)
    bk = params["bkv"][:C].reshape(1, C).astype(jnp.float32)
    bv = params["bkv"][C:].reshape(1, C).astype(jnp.float32)

    tq = _pick_seq_tile(L)
    tk = _pick_seq_tile(L)
    grid = (B, L // tq, L // tk)

    def const_spec(shape):
        return pl.BlockSpec(shape, lambda b, qi, ki: (0, 0))

    out = pl.pallas_call(
        _fused_attn_kernel,
        out_shape=jax.ShapeDtypeStruct((B, L, C), jnp.float32),
        grid_spec=pltpu.PrefetchScalarGridSpec(
            num_scalar_prefetch=0,
            grid=grid,
            in_specs=[
                pl.BlockSpec((1, C, tq), lambda b, qi, ki: (b, 0, qi)),  # z1
                pl.BlockSpec((1, C, tk), lambda b, qi, ki: (b, 0, ki)),  # z2
                const_spec((C, C)),                                      # Wq (scaled)
                const_spec((1, C)),                                      # bq (scaled)
                const_spec((C, C)),                                      # Wk
                const_spec((1, C)),                                      # bk
                const_spec((C, C)),                                      # Wv
                const_spec((1, C)),                                      # bv
            ],
            out_specs=pl.BlockSpec((1, tq, C), lambda b, qi, ki: (b, qi, 0)),
            scratch_shapes=[
                pltpu.VMEM((tq, C), compute_dtype),   # projected q tile
                pltpu.VMEM((tq, 1), jnp.float32),     # running row max
                pltpu.VMEM((tq, 1), jnp.float32),     # running row sum
                pltpu.VMEM((tq, C), jnp.float32),     # f32 output accumulator
            ],
        ),
        compiler_params=pltpu.CompilerParams(
            dimension_semantics=("parallel", "parallel", "arbitrary")),
    )(z1, z2, wq, bq, wk, bk, wv, bv)
    return out


def init_params(key, embed_dim):
    """Deterministic synthetic parameters matching nn.Linear shapes.

    q_proj:  weight (C, C),  bias (C,)
    kv_proj: weight (2C, C), bias (2C,)   (first C outputs -> k, last C -> v)
    Weights are stored pre-transposed as (in, out) for x @ W use.
    """
    C = embed_dim
    k1, k2, k3, k4 = jax.random.split(key, 4)
    scale = 1.0 / jnp.sqrt(jnp.float32(C))
    wq_t = jax.random.uniform(k1, (C, C), jnp.float32, -scale, scale)
    bq = jax.random.uniform(k2, (C,), jnp.float32, -scale, scale)
    wkv_t = jax.random.uniform(k3, (2 * C, C), jnp.float32, -scale, scale)
    bkv = jax.random.uniform(k4, (2 * C,), jnp.float32, -scale, scale)
    return {
        "wq": wq_t.T,        # (C, C)   == q_proj.weight.T
        "bq": bq,            # (C,)
        "wkv": wkv_t.T,      # (C, 2C)  == kv_proj.weight.T (k cols, then v cols)
        "bkv": bkv,          # (2C,)
    }


def _reference(z1_nchw, z2_nchw, params):
    """Pure-JAX reference mirroring the PyTorch forward."""
    B, C, H, W = z1_nchw.shape
    L = H * W
    z1 = jnp.transpose(z1_nchw.reshape(B, C, L), (0, 2, 1))
    z2 = jnp.transpose(z2_nchw.reshape(B, C, L), (0, 2, 1))
    q = z1 @ params["wq"] + params["bq"]
    kv = z2 @ params["wkv"] + params["bkv"]
    k, v = kv[..., :C], kv[..., C:]
    attn = jnp.einsum("blc,bmc->blm", q, k) * (C ** -0.5)
    attn = jax.nn.softmax(attn, axis=-1)
    return jnp.einsum("blm,bmc->blc", attn, v)


if __name__ == "__main__":
    B, C, H, W = 2, 32, 8, 8   # embed_dim = 32, L = 64
    key = jax.random.PRNGKey(0)
    kz1, kz2, kp = jax.random.split(key, 3)
    z1 = jax.random.normal(kz1, (B, C, H, W), jnp.float32)
    z2 = jax.random.normal(kz2, (B, C, H, W), jnp.float32)
    params = init_params(kp, C)

    ref = _reference(z1, z2, params)

    # f32 MXU path (exact modulo the approx EUP reciprocal in the softmax).
    out_f32 = jax.block_until_ready(
        cross_image_attention(z1, z2, params, compute_dtype=jnp.float32))
    assert out_f32.shape == (B, H * W, C)
    assert jnp.allclose(out_f32, ref, atol=1e-3, rtol=1e-3)

    # bf16 MXU path (the production setting on v5e/v6e/v7x): looser tolerance.
    out_bf16 = jax.block_until_ready(
        cross_image_attention(z1, z2, params, compute_dtype=jnp.bfloat16))
    assert out_bf16.shape == (B, H * W, C)
    assert jnp.allclose(out_bf16, ref, atol=3e-2, rtol=3e-2)

    print("KERNEL_OK")
</pallas_src>

<mosaic_0001>
module attributes {stable_mosaic.version = 11 : i64} {
  func.func @_fused_attn_kernel(%arg0: i32, %arg1: i32, %arg2: i32, %arg3: memref<1x32x64xf32, #tpu.memory_space<vmem>>, %arg4: memref<1x32x64xf32, #tpu.memory_space<vmem>>, %arg5: memref<32x32xf32, #tpu.memory_space<vmem>>, %arg6: memref<1x32xf32, #tpu.memory_space<vmem>>, %arg7: memref<32x32xf32, #tpu.memory_space<vmem>>, %arg8: memref<1x32xf32, #tpu.memory_space<vmem>>, %arg9: memref<32x32xf32, #tpu.memory_space<vmem>>, %arg10: memref<1x32xf32, #tpu.memory_space<vmem>>, %arg11: memref<1x64x32xf32, #tpu.memory_space<vmem>>, %arg12: memref<64x32xf32, #tpu.memory_space<vmem>>, %arg13: memref<64x1xf32, #tpu.memory_space<vmem>>, %arg14: memref<64x1xf32, #tpu.memory_space<vmem>>, %arg15: memref<64x32xf32, #tpu.memory_space<vmem>>) attributes {dimension_semantics = [#tpu.dimension_semantics<parallel>, #tpu.dimension_semantics<parallel>, #tpu.dimension_semantics<arbitrary>], iteration_bounds = array<i64: 2, 1, 1>, scalar_prefetch = 0 : i64, scratch_operands = 4 : i64, tpu.core_type = #tpu.core_type<tc>, window_params = [{transform_indices = @transform_0, window_bounds = array<i64: 1, 32, 64>}, {transform_indices = @transform_1, window_bounds = array<i64: 1, 32, 64>}, {pipeline_mode = #tpu.pipeline_mode<synchronous>, transform_indices = @transform_2, window_bounds = array<i64: 32, 32>}, {pipeline_mode = #tpu.pipeline_mode<synchronous>, transform_indices = @transform_3, window_bounds = array<i64: 1, 32>}, {pipeline_mode = #tpu.pipeline_mode<synchronous>, transform_indices = @transform_4, window_bounds = array<i64: 32, 32>}, {pipeline_mode = #tpu.pipeline_mode<synchronous>, transform_indices = @transform_5, window_bounds = array<i64: 1, 32>}, {pipeline_mode = #tpu.pipeline_mode<synchronous>, transform_indices = @transform_6, window_bounds = array<i64: 32, 32>}, {pipeline_mode = #tpu.pipeline_mode<synchronous>, transform_indices = @transform_7, window_bounds = array<i64: 1, 32>}, {transform_indices = @transform_8, window_bounds = array<i64: 1, 64, 32>}]} {
    %c0_i32 = arith.constant 0 : i32
    %0 = arith.cmpi eq, %arg2, %c0_i32 : i32
    %1 = arith.extui %0 : i1 to i32
    %c0_i32_0 = arith.constant 0 : i32
    %2 = arith.cmpi ne, %1, %c0_i32_0 : i32
    scf.if %2 {
      %c0_32 = arith.constant 0 : index
      %c0_33 = arith.constant 0 : index
      %c0_34 = arith.constant 0 : index
      %43 = vector.load %arg3[%c0_32, %c0_33, %c0_34] : memref<1x32x64xf32, #tpu.memory_space<vmem>>, vector<1x32x64xf32>
      %44 = vector.shape_cast %43 : vector<1x32x64xf32> to vector<32x64xf32>
      %45 = tpu.transpose %44, [1, 0] : vector<32x64xf32> -> vector<64x32xf32>
      %c0_35 = arith.constant 0 : index
      %c0_36 = arith.constant 0 : index
      %46 = vector.load %arg5[%c0_35, %c0_36] : memref<32x32xf32, #tpu.memory_space<vmem>>, vector<32x32xf32>
      %cst_37 = arith.constant dense<0.000000e+00> : vector<64x32xf32>
      %47 = tpu.matmul %45, %46, %cst_37 {dimension_numbers = #tpu.dot_dimension_numbers<[1], [0], [0], [1], [0, 0, 1, 1], [], []>} : vector<64x32xf32>, vector<32x32xf32>, vector<64x32xf32> -> vector<64x32xf32>
      %c0_38 = arith.constant 0 : index
      %c0_39 = arith.constant 0 : index
      %48 = vector.load %arg6[%c0_38, %c0_39] : memref<1x32xf32, #tpu.memory_space<vmem>>, vector<1x32xf32>
      %49 = vector.broadcast %48 : vector<1x32xf32> to vector<64x32xf32>
      %50 = arith.addf %47, %49 : vector<64x32xf32>
      %c0_40 = arith.constant 0 : index
      %c0_41 = arith.constant 0 : index
      %51 = vector.load %arg12[%c0_40, %c0_41] : memref<64x32xf32, #tpu.memory_space<vmem>>, vector<64x32xf32>
      tpu.vector_store %arg12[%c0_40, %c0_41], %50 {strides = array<i32>} : memref<64x32xf32, #tpu.memory_space<vmem>>, vector<64x32xf32>,
      %cst_42 = arith.constant 0xFF800000 : f32
      %52 = vector.broadcast %cst_42 : f32 to vector<64x1xf32>
      %c0_43 = arith.constant 0 : index
      %c0_44 = arith.constant 0 : index
      %53 = vector.load %arg13[%c0_43, %c0_44] : memref<64x1xf32, #tpu.memory_space<vmem>>, vector<64x1xf32>
      tpu.vector_store %arg13[%c0_43, %c0_44], %52 {strides = array<i32>} : memref<64x1xf32, #tpu.memory_space<vmem>>, vector<64x1xf32>,
      %cst_45 = arith.constant 0.000000e+00 : f32
      %54 = vector.broadcast %cst_45 : f32 to vector<64x1xf32>
      %c0_46 = arith.constant 0 : index
      %c0_47 = arith.constant 0 : index
      %55 = vector.load %arg14[%c0_46, %c0_47] : memref<64x1xf32, #tpu.memory_space<vmem>>, vector<64x1xf32>
      tpu.vector_store %arg14[%c0_46, %c0_47], %54 {strides = array<i32>} : memref<64x1xf32, #tpu.memory_space<vmem>>, vector<64x1xf32>,
      %cst_48 = arith.constant 0.000000e+00 : f32
      %56 = vector.broadcast %cst_48 : f32 to vector<64x32xf32>
      %c0_49 = arith.constant 0 : index
      %c0_50 = arith.constant 0 : index
      %57 = vector.load %arg15[%c0_49, %c0_50] : memref<64x32xf32, #tpu.memory_space<vmem>>, vector<64x32xf32>
      tpu.vector_store %arg15[%c0_49, %c0_50], %56 {strides = array<i32>} : memref<64x32xf32, #tpu.memory_space<vmem>>, vector<64x32xf32>,
    } else {
    }
    %c0 = arith.constant 0 : index
    %c0_1 = arith.constant 0 : index
    %c0_2 = arith.constant 0 : index
    %3 = vector.load %arg4[%c0, %c0_1, %c0_2] : memref<1x32x64xf32, #tpu.memory_space<vmem>>, vector<1x32x64xf32>
    %4 = vector.shape_cast %3 : vector<1x32x64xf32> to vector<32x64xf32>
    %5 = tpu.transpose %4, [1, 0] : vector<32x64xf32> -> vector<64x32xf32>
    %c0_3 = arith.constant 0 : index
    %c0_4 = arith.constant 0 : index
    %6 = vector.load %arg7[%c0_3, %c0_4] : memref<32x32xf32, #tpu.memory_space<vmem>>, vector<32x32xf32>
    %cst = arith.constant dense<0.000000e+00> : vector<64x32xf32>
    %7 = tpu.matmul %5, %6, %cst {dimension_numbers = #tpu.dot_dimension_numbers<[1], [0], [0], [1], [0, 0, 1, 1], [], []>} : vector<64x32xf32>, vector<32x32xf32>, vector<64x32xf32> -> vector<64x32xf32>
    %c0_5 = arith.constant 0 : index
    %c0_6 = arith.constant 0 : index
    %8 = vector.load %arg8[%c0_5, %c0_6] : memref<1x32xf32, #tpu.memory_space<vmem>>, vector<1x32xf32>
    %9 = vector.broadcast %8 : vector<1x32xf32> to vector<64x32xf32>
    %10 = arith.addf %7, %9 : vector<64x32xf32>
    %c0_7 = arith.constant 0 : index
    %c0_8 = arith.constant 0 : index
    %11 = vector.load %arg9[%c0_7, %c0_8] : memref<32x32xf32, #tpu.memory_space<vmem>>, vector<32x32xf32>
    %cst_9 = arith.constant dense<0.000000e+00> : vector<64x32xf32>
    %12 = tpu.matmul %5, %11, %cst_9 {dimension_numbers = #tpu.dot_dimension_numbers<[1], [0], [0], [1], [0, 0, 1, 1], [], []>} : vector<64x32xf32>, vector<32x32xf32>, vector<64x32xf32> -> vector<64x32xf32>
    %c0_10 = arith.constant 0 : index
    %c0_11 = arith.constant 0 : index
    %13 = vector.load %arg10[%c0_10, %c0_11] : memref<1x32xf32, #tpu.memory_space<vmem>>, vector<1x32xf32>
    %14 = vector.broadcast %13 : vector<1x32xf32> to vector<64x32xf32>
    %15 = arith.addf %12, %14 : vector<64x32xf32>
    %c0_12 = arith.constant 0 : index
    %c0_13 = arith.constant 0 : index
    %16 = vector.load %arg12[%c0_12, %c0_13] : memref<64x32xf32, #tpu.memory_space<vmem>>, vector<64x32xf32>
    %cst_14 = arith.constant dense<0.000000e+00> : vector<64x64xf32>
    %17 = tpu.matmul %16, %10, %cst_14 {dimension_numbers = #tpu.dot_dimension_numbers<[1], [1], [0], [0], [0, 0, 1, 0], [], []>} : vector<64x32xf32>, vector<64x32xf32>, vector<64x64xf32> -> vector<64x64xf32>
    %c0_15 = arith.constant 0 : index
    %c0_16 = arith.constant 0 : index
    %18 = vector.load %arg13[%c0_15, %c0_16] : memref<64x1xf32, #tpu.memory_space<vmem>>, vector<64x1xf32>
    %cst_17 = arith.constant dense<0xFF800000> : vector<64xf32>
    %19 = vector.multi_reduction <maximumf>, %17, %cst_17 [1] : vector<64x64xf32> to vector<64xf32>
    %20 = vector.shape_cast %19 : vector<64xf32> to vector<64x1xf32>
    %21 = arith.maximumf %18, %20 : vector<64x1xf32>
    %22 = arith.subf %18, %21 : vector<64x1xf32>
    %23 = math.exp %22 : vector<64x1xf32>
    %24 = vector.broadcast %21 : vector<64x1xf32> to vector<64x64xf32>
    %25 = arith.subf %17, %24 : vector<64x64xf32>
    %26 = math.exp %25 : vector<64x64xf32>
    %c0_18 = arith.constant 0 : index
    %c0_19 = arith.constant 0 : index
    %27 = vector.load %arg14[%c0_18, %c0_19] : memref<64x1xf32, #tpu.memory_space<vmem>>, vector<64x1xf32>
    %28 = arith.mulf %23, %27 : vector<64x1xf32>
    %cst_20 = arith.constant dense<0.000000e+00> : vector<64xf32>
    %29 = vector.multi_reduction <add>, %26, %cst_20 [1] : vector<64x64xf32> to vector<64xf32>
    %30 = vector.shape_cast %29 : vector<64xf32> to vector<64x1xf32>
    %31 = arith.addf %28, %30 : vector<64x1xf32>
    %c0_21 = arith.constant 0 : index
    %c0_22 = arith.constant 0 : index
    %32 = vector.load %arg14[%c0_21, %c0_22] : memref<64x1xf32, #tpu.memory_space<vmem>>, vector<64x1xf32>
    tpu.vector_store %arg14[%c0_21, %c0_22], %31 {strides = array<i32>} : memref<64x1xf32, #tpu.memory_space<vmem>>, vector<64x1xf32>,
    %c0_23 = arith.constant 0 : index
    %c0_24 = arith.constant 0 : index
    %33 = vector.load %arg15[%c0_23, %c0_24] : memref<64x32xf32, #tpu.memory_space<vmem>>, vector<64x32xf32>
    %34 = vector.broadcast %23 : vector<64x1xf32> to vector<64x32xf32>
    %35 = arith.mulf %34, %33 : vector<64x32xf32>
    %cst_25 = arith.constant dense<0.000000e+00> : vector<64x32xf32>
    %36 = tpu.matmul %26, %15, %cst_25 {dimension_numbers = #tpu.dot_dimension_numbers<[1], [0], [0], [1], [0, 0, 1, 1], [], []>} : vector<64x64xf32>, vector<64x32xf32>, vector<64x32xf32> -> vector<64x32xf32>
    %37 = arith.addf %35, %36 : vector<64x32xf32>
    %c0_26 = arith.constant 0 : index
    %c0_27 = arith.constant 0 : index
    %38 = vector.load %arg15[%c0_26, %c0_27] : memref<64x32xf32, #tpu.memory_space<vmem>>, vector<64x32xf32>
    tpu.vector_store %arg15[%c0_26, %c0_27], %37 {strides = array<i32>} : memref<64x32xf32, #tpu.memory_space<vmem>>, vector<64x32xf32>,
    %c0_28 = arith.constant 0 : index
    %c0_29 = arith.constant 0 : index
    %39 = vector.load %arg13[%c0_28, %c0_29] : memref<64x1xf32, #tpu.memory_space<vmem>>, vector<64x1xf32>
    tpu.vector_store %arg13[%c0_28, %c0_29], %21 {strides = array<i32>} : memref<64x1xf32, #tpu.memory_space<vmem>>, vector<64x1xf32>,
    %c0_i32_30 = arith.constant 0 : i32
    %40 = arith.cmpi eq, %arg2, %c0_i32_30 : i32
    %41 = arith.extui %40 : i1 to i32
    %c0_i32_31 = arith.constant 0 : i32
    %42 = arith.cmpi ne, %41, %c0_i32_31 : i32
    scf.if %42 {
      %c0_32 = arith.constant 0 : index
      %c0_33 = arith.constant 0 : index
      %43 = vector.load %arg15[%c0_32, %c0_33] : memref<64x32xf32, #tpu.memory_space<vmem>>, vector<64x32xf32>
      %c0_34 = arith.constant 0 : index
      %c0_35 = arith.constant 0 : index
      %44 = vector.load %arg14[%c0_34, %c0_35] : memref<64x1xf32, #tpu.memory_space<vmem>>, vector<64x1xf32>
      %45 = tpu.reciprocal %44 {approx = true} : vector<64x1xf32> -> vector<64x1xf32>
      %46 = vector.broadcast %45 : vector<64x1xf32> to vector<64x32xf32>
      %47 = arith.mulf %43, %46 : vector<64x32xf32>
      %c0_36 = arith.constant 0 : index
      %c0_37 = arith.constant 0 : index
      %c0_38 = arith.constant 0 : index
      %48 = vector.load %arg11[%c0_36, %c0_37, %c0_38] : memref<1x64x32xf32, #tpu.memory_space<vmem>>, vector<1x64x32xf32>
      %49 = vector.shape_cast %48 : vector<1x64x32xf32> to vector<64x32xf32>
      %50 = vector.shape_cast %47 : vector<64x32xf32> to vector<1x64x32xf32>
      tpu.vector_store %arg11[%c0_36, %c0_37, %c0_38], %50 {strides = array<i32>} : memref<1x64x32xf32, #tpu.memory_space<vmem>>, vector<1x64x32xf32>,
    } else {
    }
    return
  }
  func.func @transform_0(%arg0: i32, %arg1: i32, %arg2: i32) -> (i32, i32, i32) {
    %c0_i32 = arith.constant 0 : i32
    %c0_i32_0 = arith.constant 0 : i32
    return %arg0, %c0_i32, %arg1 : i32, i32, i32
  }
  func.func @transform_1(%arg0: i32, %arg1: i32, %arg2: i32) -> (i32, i32, i32) {
    %c0_i32 = arith.constant 0 : i32
    %c0_i32_0 = arith.constant 0 : i32
    return %arg0, %c0_i32, %arg2 : i32, i32, i32
  }
  func.func @transform_2(%arg0: i32, %arg1: i32, %arg2: i32) -> (i32, i32) {
    %c0_i32 = arith.constant 0 : i32
    %c0_i32_0 = arith.constant 0 : i32
    %c0_i32_1 = arith.constant 0 : i32
    return %c0_i32, %c0_i32_0 : i32, i32
  }
  func.func @transform_3(%arg0: i32, %arg1: i32, %arg2: i32) -> (i32, i32) {
    %c0_i32 = arith.constant 0 : i32
    %c0_i32_0 = arith.constant 0 : i32
    %c0_i32_1 = arith.constant 0 : i32
    return %c0_i32, %c0_i32_0 : i32, i32
  }
  func.func @transform_4(%arg0: i32, %arg1: i32, %arg2: i32) -> (i32, i32) {
    %c0_i32 = arith.constant 0 : i32
    %c0_i32_0 = arith.constant 0 : i32
    %c0_i32_1 = arith.constant 0 : i32
    return %c0_i32, %c0_i32_0 : i32, i32
  }
  func.func @transform_5(%arg0: i32, %arg1: i32, %arg2: i32) -> (i32, i32) {
    %c0_i32 = arith.constant 0 : i32
    %c0_i32_0 = arith.constant 0 : i32
    %c0_i32_1 = arith.constant 0 : i32
    return %c0_i32, %c0_i32_0 : i32, i32
  }
  func.func @transform_6(%arg0: i32, %arg1: i32, %arg2: i32) -> (i32, i32) {
    %c0_i32 = arith.constant 0 : i32
    %c0_i32_0 = arith.constant 0 : i32
    %c0_i32_1 = arith.constant 0 : i32
    return %c0_i32, %c0_i32_0 : i32, i32
  }
  func.func @transform_7(%arg0: i32, %arg1: i32, %arg2: i32) -> (i32, i32) {
    %c0_i32 = arith.constant 0 : i32
    %c0_i32_0 = arith.constant 0 : i32
    %c0_i32_1 = arith.constant 0 : i32
    return %c0_i32, %c0_i32_0 : i32, i32
  }
  func.func @transform_8(%arg0: i32, %arg1: i32, %arg2: i32) -> (i32, i32, i32) {
    %c0_i32 = arith.constant 0 : i32
    %c0_i32_0 = arith.constant 0 : i32
    return %arg0, %arg1, %c0_i32 : i32, i32, i32
  }
}

</mosaic_0001>

<llo_original>
// kernel: tpu_custom_call.1
$region0: #{tpu_custom_call.1}
  #allocation0 [shape = 'u32[]', space=smem, size = 0x4, offset = 0x4, fixed_abs, tag = 'smem constant byte address 0x4 - core index']
  #allocation1 [shape = 'u32[144,128]{1,0:T(1,128)}', space=vmem, size = 0x12000, scoped, tag = 'internal scratch']
  #allocation2 [shape = 'f32[64,32]{1,0:T(8,128)}', space=vmem, size = 0x8000, scoped, tag = 'scratch operand']
  #allocation3 [shape = 'f32[64,1]{1,0:T(8,128)}', space=vmem, size = 0x8000, scoped, tag = 'scratch operand']
  #allocation4 [shape = 'f32[64,1]{1,0:T(8,128)}', space=vmem, size = 0x8000, scoped, tag = 'scratch operand']
  #allocation5 [shape = 'f32[64,32]{1,0:T(8,128)}', space=vmem, size = 0x8000, scoped, tag = 'scratch operand']
  %s0 = inlined_call_operand.hbm [shape: f32[2,32,64], index: 0, kind: input, shape index: {}]
  %s1 = inlined_call_operand.hbm [shape: f32[2,32,64], index: 1, kind: input, shape index: {}]
  %s2 = inlined_call_operand.hbm [shape: f32[32,32], index: 2, kind: input, shape index: {}]
  %s3 = inlined_call_operand.vmem [shape: f32[1,32], index: 3, kind: input, shape index: {}]
  %s4 = inlined_call_operand.hbm [shape: f32[32,32], index: 4, kind: input, shape index: {}]
  %s5 = inlined_call_operand.vmem [shape: f32[1,32], index: 5, kind: input, shape index: {}]
  %s6 = inlined_call_operand.hbm [shape: f32[32,32], index: 6, kind: input, shape index: {}]
  %s7 = inlined_call_operand.vmem [shape: f32[1,32], index: 7, kind: input, shape index: {}]
  %s8 = inlined_call_operand.vmem [shape: f32[2,64,32], index: 8, kind: output, shape index: {}]
  %s9 = sld [smem:[#allocation0]]
  $region93: #{tpu_custom_call.1} parent=0
    _
  %s11 = ssub.s32 1, %s9
  %s12 = scalar_select 0, %s11, %s9
  $region1: #{tpu_custom_call.1} parent=0
    #allocation6 [shape = 'u8[32768]{0}', space=vmem, size = 0x8000, scoped, tag = 'input window, operand 0']
    #allocation7 [shape = 's32[2]{0}', space=sflag, size = 0x8, scoped, tag = 'scoped memory for tpu_custom_call.1']
    #allocation8 [shape = 'u8[32768]{0}', space=vmem, size = 0x8000, scoped, tag = 'input window, operand 1']
    #allocation9 [shape = 's32[2]{0}', space=sflag, size = 0x8, scoped, tag = 'scoped memory for tpu_custom_call.1']
    #allocation10 [shape = 'u8[16384]{0}', space=vmem, size = 0x4000, scoped, tag = 'input window, operand 2, single buffered']
    #allocation11 [shape = 'u8[16384]{0}', space=vmem, size = 0x4000, scoped, tag = 'input window, operand 4, single buffered']
    #allocation12 [shape = 's32[1]{0}', space=sflag, size = 0x4, scoped, tag = 'scoped memory for tpu_custom_call.1']
    #allocation13 [shape = 'u8[16384]{0}', space=vmem, size = 0x4000, scoped, tag = 'input window, operand 6, single buffered']
    %13 = vsyncpa [#allocation7], 0
    %s14 = scalar_lea.sflag [#allocation7], 1
    %15 = vsyncpa %s14, 0
    %16 = vsyncpa [#allocation9], 0
    %s17 = scalar_lea.sflag [#allocation9], 1
    %18 = vsyncpa %s17, 0
    %19 = vsyncpa [#allocation12], 0
    loop: start=0, step=1, limit=4
    $region2: #{tpu_custom_call.1} parent=1 // loop_pre_header
      _
    $region3: #{tpu_custom_call.1} parent=1 // loop_header
      %s21 = sphi 0, %s25
      %p22 = scmp.ge.s32.totalorder %s21, 4
      %s28 = sphi 0, %s47
      %s29 = sphi 0, %s43
      %s30 = sphi 0, %s39
      %s31 = sphi 0, %s28
      %s32 = sphi 0, %s29
      %s33 = sphi 0, %s30
      %s34 = sphi 0, %s31
      %s35 = sphi 0, %s32
      %s36 = sphi 0, %s33
      %s52 = sphi 0, %s54
      %s55 = sphi 0, %s52
      %s56 = sphi 0, %s55
      %s72 = sphi 0, %s56
      %s80 = sphi 0, %s82
      %s83 = sphi 0, %s80
      %s84 = sphi 0, %s83
      %s100 = sphi 0, %s84
      %s104 = sphi 0, %s104
      %s106 = sphi 0, %s104
      %s107 = sphi 0, %s106
      %s121 = sphi 0, %s107
      %s125 = sphi 0, %s125
      %s127 = sphi 0, %s125
      %s128 = sphi 0, %s127
      %s142 = sphi 0, %s128
      %s146 = sphi 0, %s146
      %s148 = sphi 0, %s146
      %s149 = sphi 0, %s148
      %s163 = sphi 0, %s149
      %s167 = sphi 0, %s167
      %s169 = sphi 0, %s167
      %s170 = sphi 0, %s169
      %s184 = sphi 0, %s170
      %s188 = sphi 0, %s188
      %s190 = sphi 0, %s188
      %s191 = sphi 0, %s190
      %s205 = sphi 0, %s191
      %s209 = sphi 0, %s209
      %s211 = sphi 0, %s209
      %s212 = sphi 0, %s211
      %s226 = sphi 0, %s212
      %s234 = sphi 0, %s236
      %s237 = sphi 0, %s234
      %s238 = sphi 0, %s237
      %s254 = sphi 0, %s238
    $region4: #{tpu_custom_call.1} parent=1 // loop_header_branch
      %24 = sbr.rel (%p22) target = $region8
    $region5: #{tpu_custom_call.1} parent=1 // loop_body
      %s26 = ssub.s32 %s21, 1
      %s27 = ssub.s32 %s21, 2
      %s37 = sadd.s32 1, %s30
      %p38 = scmp.ge.s32.totalorder %s37, 1
      %s39 = scalar_select %p38, 0, %s37
      %s40 = sadd.s32 1, %s29
      %s41 = scalar_select %p38, %s40, %s29
      %p42 = scmp.ge.s32.totalorder %s41, 1
      %s43 = scalar_select %p42, 0, %s41
      %s44 = sadd.s32 1, %s28
      %s45 = scalar_select %p42, %s44, %s28
      %p46 = scmp.ge.s32.totalorder %s45, 2
      %s47 = scalar_select %p46, 0, %s45
      %s48 = ssub.s32 %s28, %s47
      %s49 = ssub.s32 %s29, %s43
      %s50 = sor.u32 %s48, %s49
      %p51 = scmp.eq.s32.totalorder %s50, 0
      %s53 = sadd.s32 %s52, 1
      %s54 = scalar_select %p51, %s52, %s53
      %p57 = pneg %p51
      %p58 = scmp.eq.s32.totalorder %s21, 1
      %p59 = por %p57, %p58
      %p60 = scmp.ne.s32.totalorder %s52, %s55
      %p61 = scmp.eq.s32.totalorder %s21, 0
      %p62 = por %p60, %p61
      %p63 = scmp.ne.s32.totalorder %s52, %s55
      %p64 = scmp.eq.s32.totalorder %s26, 1
      %p65 = por %p63, %p64
      %p66 = scmp.ne.s32.totalorder %s55, %s56
      %p67 = scmp.eq.s32.totalorder %s26, 0
      %p68 = por %p66, %p67
      %p69 = scmp.ne.s32.totalorder %s55, %s56
      %p70 = scmp.eq.s32.totalorder %s27, 1
      %p71 = por %p69, %p70
      %p73 = scmp.ne.s32.totalorder %s56, %s72
      %p74 = scmp.eq.s32.totalorder %s27, 0
      %p75 = por %p73, %p74
      %s76 = ssub.s32 %s28, %s47
      %s77 = ssub.s32 %s30, %s39
      %s78 = sor.u32 %s76, %s77
      %p79 = scmp.eq.s32.totalorder %s78, 0
      %s81 = sadd.s32 %s80, 1
      %s82 = scalar_select %p79, %s80, %s81
      %p85 = pneg %p79
      %p86 = scmp.eq.s32.totalorder %s21, 1
      %p87 = por %p85, %p86
      %p88 = scmp.ne.s32.totalorder %s80, %s83
      %p89 = scmp.eq.s32.totalorder %s21, 0
      %p90 = por %p88, %p89
      %p91 = scmp.ne.s32.totalorder %s80, %s83
      %p92 = scmp.eq.s32.totalorder %s26, 1
      %p93 = por %p91, %p92
      %p94 = scmp.ne.s32.totalorder %s83, %s84
      %p95 = scmp.eq.s32.totalorder %s26, 0
      %p96 = por %p94, %p95
      %p97 = scmp.ne.s32.totalorder %s83, %s84
      %p98 = scmp.eq.s32.totalorder %s27, 1
      %p99 = por %p97, %p98
      %p101 = scmp.ne.s32.totalorder %s84, %s100
      %p102 = scmp.eq.s32.totalorder %s27, 0
      %p103 = por %p101, %p102
      %s105 = sadd.s32 %s104, 1
      %p108 = scmp.eq.s32.totalorder %s21, 1
      %p109 = scmp.ne.s32.totalorder %s104, %s106
      %p110 = scmp.eq.s32.totalorder %s21, 0
      %p111 = por %p109, %p110
      %p112 = scmp.ne.s32.totalorder %s104, %s106
      %p113 = scmp.eq.s32.totalorder %s26, 1
      %p114 = por %p112, %p113
      %p115 = scmp.ne.s32.totalorder %s106, %s107
      %p116 = scmp.eq.s32.totalorder %s26, 0
      %p117 = por %p115, %p116
      %p118 = scmp.ne.s32.totalorder %s106, %s107
      %p119 = scmp.eq.s32.totalorder %s27, 1
      %p120 = por %p118, %p119
      %p122 = scmp.ne.s32.totalorder %s107, %s121
      %p123 = scmp.eq.s32.totalorder %s27, 0
      %p124 = por %p122, %p123
      %s126 = sadd.s32 %s125, 1
      %p129 = scmp.eq.s32.totalorder %s21, 1
      %p130 = scmp.ne.s32.totalorder %s125, %s127
      %p131 = scmp.eq.s32.totalorder %s21, 0
      %p132 = por %p130, %p131
      %p133 = scmp.ne.s32.totalorder %s125, %s127
      %p134 = scmp.eq.s32.totalorder %s26, 1
      %p135 = por %p133, %p134
      %p136 = scmp.ne.s32.totalorder %s127, %s128
      %p137 = scmp.eq.s32.totalorder %s26, 0
      %p138 = por %p136, %p137
      %p139 = scmp.ne.s32.totalorder %s127, %s128
      %p140 = scmp.eq.s32.totalorder %s27, 1
      %p141 = por %p139, %p140
      %p143 = scmp.ne.s32.totalorder %s128, %s142
      %p144 = scmp.eq.s32.totalorder %s27, 0
      %p145 = por %p143, %p144
      %s147 = sadd.s32 %s146, 1
      %p150 = scmp.eq.s32.totalorder %s21, 1
      %p151 = scmp.ne.s32.totalorder %s146, %s148
      %p152 = scmp.eq.s32.totalorder %s21, 0
      %p153 = por %p151, %p152
      %p154 = scmp.ne.s32.totalorder %s146, %s148
      %p155 = scmp.eq.s32.totalorder %s26, 1
      %p156 = por %p154, %p155
      %p157 = scmp.ne.s32.totalorder %s148, %s149
      %p158 = scmp.eq.s32.totalorder %s26, 0
      %p159 = por %p157, %p158
      %p160 = scmp.ne.s32.totalorder %s148, %s149
      %p161 = scmp.eq.s32.totalorder %s27, 1
      %p162 = por %p160, %p161
      %p164 = scmp.ne.s32.totalorder %s149, %s163
      %p165 = scmp.eq.s32.totalorder %s27, 0
      %p166 = por %p164, %p165
      %s168 = sadd.s32 %s167, 1
      %p171 = scmp.eq.s32.totalorder %s21, 1
      %p172 = scmp.ne.s32.totalorder %s167, %s169
      %p173 = scmp.eq.s32.totalorder %s21, 0
      %p174 = por %p172, %p173
      %p175 = scmp.ne.s32.totalorder %s167, %s169
      %p176 = scmp.eq.s32.totalorder %s26, 1
      %p177 = por %p175, %p176
      %p178 = scmp.ne.s32.totalorder %s169, %s170
      %p179 = scmp.eq.s32.totalorder %s26, 0
      %p180 = por %p178, %p179
      %p181 = scmp.ne.s32.totalorder %s169, %s170
      %p182 = scmp.eq.s32.totalorder %s27, 1
      %p183 = por %p181, %p182
      %p185 = scmp.ne.s32.totalorder %s170, %s184
      %p186 = scmp.eq.s32.totalorder %s27, 0
      %p187 = por %p185, %p186
      %s189 = sadd.s32 %s188, 1
      %p192 = scmp.eq.s32.totalorder %s21, 1
      %p193 = scmp.ne.s32.totalorder %s188, %s190
      %p194 = scmp.eq.s32.totalorder %s21, 0
      %p195 = por %p193, %p194
      %p196 = scmp.ne.s32.totalorder %s188, %s190
      %p197 = scmp.eq.s32.totalorder %s26, 1
      %p198 = por %p196, %p197
      %p199 = scmp.ne.s32.totalorder %s190, %s191
      %p200 = scmp.eq.s32.totalorder %s26, 0
      %p201 = por %p199, %p200
      %p202 = scmp.ne.s32.totalorder %s190, %s191
      %p203 = scmp.eq.s32.totalorder %s27, 1
      %p204 = por %p202, %p203
      %p206 = scmp.ne.s32.totalorder %s191, %s205
      %p207 = scmp.eq.s32.totalorder %s27, 0
      %p208 = por %p206, %p207
      %s210 = sadd.s32 %s209, 1
      %p213 = scmp.eq.s32.totalorder %s21, 1
      %p214 = scmp.ne.s32.totalorder %s209, %s211
      %p215 = scmp.eq.s32.totalorder %s21, 0
      %p216 = por %p214, %p215
      %p217 = scmp.ne.s32.totalorder %s209, %s211
      %p218 = scmp.eq.s32.totalorder %s26, 1
      %p219 = por %p217, %p218
      %p220 = scmp.ne.s32.totalorder %s211, %s212
      %p221 = scmp.eq.s32.totalorder %s26, 0
      %p222 = por %p220, %p221
      %p223 = scmp.ne.s32.totalorder %s211, %s212
      %p224 = scmp.eq.s32.totalorder %s27, 1
      %p225 = por %p223, %p224
      %p227 = scmp.ne.s32.totalorder %s212, %s226
      %p228 = scmp.eq.s32.totalorder %s27, 0
      %p229 = por %p227, %p228
      %s230 = ssub.s32 %s28, %s47
      %s231 = ssub.s32 %s29, %s43
      %s232 = sor.u32 %s230, %s231
      %p233 = scmp.eq.s32.totalorder %s232, 0
      %s235 = sadd.s32 %s234, 1
      %s236 = scalar_select %p233, %s234, %s235
      %p239 = pneg %p233
      %p240 = scmp.eq.s32.totalorder %s21, 1
      %p241 = por %p239, %p240
      %p242 = scmp.ne.s32.totalorder %s234, %s237
      %p243 = scmp.eq.s32.totalorder %s21, 0
      %p244 = por %p242, %p243
      %p245 = scmp.ne.s32.totalorder %s234, %s237
      %p246 = scmp.eq.s32.totalorder %s26, 1
      %p247 = por %p245, %p246
      %p248 = scmp.ne.s32.totalorder %s237, %s238
      %p249 = scmp.eq.s32.totalorder %s26, 0
      %p250 = por %p248, %p249
      %p251 = scmp.ne.s32.totalorder %s237, %s238
      %p252 = scmp.eq.s32.totalorder %s27, 1
      %p253 = por %p251, %p252
      %p255 = scmp.ne.s32.totalorder %s238, %s254
      %p256 = scmp.eq.s32.totalorder %s27, 0
      %p257 = por %p255, %p256
      %p258 = scmp.le.s32.totalorder 1, %s21
      %p259 = scmp.lt.s32.totalorder %s21, 3
      %p260 = pnand %p258, %p259
      %p261 = pneg %p260
      // Predicated region
      $region9: #{tpu_custom_call.1} parent=5 // pred_check
        _
      $region10: #{tpu_custom_call.1} parent=5 // pred_check_branch
        %263 = sbr.rel (%p260) target = $region12
      $region11: #{tpu_custom_call.1} parent=5 // pred_region
        %s264 = ssub.s32 %s21, 1
        // Predicated region
        $region13: #{tpu_custom_call.1} parent=11 // pred_check
          %p265 = pneg %p117
        $region14: #{tpu_custom_call.1} parent=11 // pred_check_branch
          %267 = sbr.rel (%p265) target = $region16
        $region15: #{tpu_custom_call.1} parent=11 // pred_region
          %s269 = ssub.s32 512, 512
          %270 = vsyncadd [#allocation9], %s269
          %s271 = sshll.u32 [#allocation10], 4
          %s272 = int_to_ptr.vmem [resolvable:$true] %s271
          %277 = dma.hbm_to_vmem [thread:$0]  %s2, 512, %s272, [#allocation9], 128, 128, 8
        $region16: #{tpu_custom_call.1} parent=11 // pred_fallthru
          _
        // Predicated region
        $region17: #{tpu_custom_call.1} parent=11 // pred_check
          %p278 = pneg %p138
        $region18: #{tpu_custom_call.1} parent=11 // pred_check_branch
          %280 = sbr.rel (%p278) target = $region20
        $region19: #{tpu_custom_call.1} parent=11 // pred_region
          _
        $region20: #{tpu_custom_call.1} parent=11 // pred_fallthru
          _
        // Predicated region
        $region21: #{tpu_custom_call.1} parent=11 // pred_check
          %p281 = pneg %p159
        $region22: #{tpu_custom_call.1} parent=11 // pred_check_branch
          %283 = sbr.rel (%p281) target = $region24
        $region23: #{tpu_custom_call.1} parent=11 // pred_region
          %s285 = ssub.s32 512, 512
          %286 = vsyncadd [#allocation12], %s285
          %s287 = sshll.u32 [#allocation11], 4
          %s288 = int_to_ptr.vmem [resolvable:$true] %s287
          %293 = dma.hbm_to_vmem [thread:$0]  %s4, 512, %s288, [#allocation12], 128, 128, 8
        $region24: #{tpu_custom_call.1} parent=11 // pred_fallthru
          _
        // Predicated region
        $region25: #{tpu_custom_call.1} parent=11 // pred_check
          %p294 = pneg %p180
        $region26: #{tpu_custom_call.1} parent=11 // pred_check_branch
          %296 = sbr.rel (%p294) target = $region28
        $region27: #{tpu_custom_call.1} parent=11 // pred_region
          _
        $region28: #{tpu_custom_call.1} parent=11 // pred_fallthru
          _
        // Predicated region
        $region29: #{tpu_custom_call.1} parent=11 // pred_check
          %p297 = pneg %p201
        $region30: #{tpu_custom_call.1} parent=11 // pred_check_branch
          %299 = sbr.rel (%p297) target = $region32
        $region31: #{tpu_custom_call.1} parent=11 // pred_region
          %s301 = ssub.s32 512, 512
          %302 = vsyncadd [#allocation12], %s301
          %s303 = sshll.u32 [#allocation13], 4
          %s304 = int_to_ptr.vmem [resolvable:$true] %s303
          %309 = dma.hbm_to_vmem [thread:$0]  %s6, 512, %s304, [#allocation12], 128, 128, 8
        $region32: #{tpu_custom_call.1} parent=11 // pred_fallthru
          _
        // Predicated region
        $region33: #{tpu_custom_call.1} parent=11 // pred_check
          %p310 = pneg %p222
        $region34: #{tpu_custom_call.1} parent=11 // pred_check_branch
          %312 = sbr.rel (%p310) target = $region36
        $region35: #{tpu_custom_call.1} parent=11 // pred_region
          _
        $region36: #{tpu_custom_call.1} parent=11 // pred_fallthru
          _
      $region12: #{tpu_custom_call.1} parent=5 // pred_fallthru
        _
      %p313 = scmp.lt.s32.totalorder %s21, 2
      // Predicated region
      $region37: #{tpu_custom_call.1} parent=5 // pred_check
        %p314 = pneg %p313
      $region38: #{tpu_custom_call.1} parent=5 // pred_check_branch
        %316 = sbr.rel (%p314) target = $region40
      $region39: #{tpu_custom_call.1} parent=5 // pred_region
        // Predicated region
        $region41: #{tpu_custom_call.1} parent=39 // pred_check
          %p317 = pneg %p62
        $region42: #{tpu_custom_call.1} parent=39 // pred_check_branch
          %319 = sbr.rel (%p317) target = $region44
        $region43: #{tpu_custom_call.1} parent=39 // pred_region
          %s320 = sand.u32 %s52, 1
          %s321 = scalar_lea.sflag [#allocation7], %s320
          %s322 = sand.u32 %s52, 1
          %s323 = smul.addr %s322, 32
          %s324 = scalar_lea.vmem [#allocation6], %s323
          %s326 = ssub.s32 512, 512
          %327 = vsyncadd %s321, %s326
          %s328 = smul.addr %s28, 4
          %s329 = sadd.s32 %s29, %s328
          %s330 = smul.addr %s329, 128
          %s331 = scalar_lea.hbm %s0, %s330
          %s332 = sshll.u32 %s324, 4
          %s333 = int_to_ptr.vmem [resolvable:$true] %s332
          %338 = dma.hbm_to_vmem [thread:$0]  %s331, 512, %s333, %s321, 128, 128, 8
        $region44: #{tpu_custom_call.1} parent=39 // pred_fallthru
          _
        // Predicated region
        $region45: #{tpu_custom_call.1} parent=39 // pred_check
          %p339 = pneg %p90
        $region46: #{tpu_custom_call.1} parent=39 // pred_check_branch
          %341 = sbr.rel (%p339) target = $region48
        $region47: #{tpu_custom_call.1} parent=39 // pred_region
          %s342 = sand.u32 %s21, 1
          %s343 = scalar_lea.sflag [#allocation9], %s342
          %s344 = sand.u32 %s80, 1
          %s345 = smul.addr %s344, 32
          %s346 = scalar_lea.vmem [#allocation8], %s345
          %s348 = ssub.s32 512, 512
          %349 = vsyncadd %s343, %s348
          %s350 = smul.addr %s28, 4
          %s351 = sadd.s32 %s30, %s350
          %s352 = smul.addr %s351, 128
          %s353 = scalar_lea.hbm %s1, %s352
          %s354 = sshll.u32 %s346, 4
          %s355 = int_to_ptr.vmem [resolvable:$true] %s354
          %360 = dma.hbm_to_vmem [thread:$0]  %s353, 512, %s355, %s343, 128, 128, 8
        $region48: #{tpu_custom_call.1} parent=39 // pred_fallthru
          _
      $region40: #{tpu_custom_call.1} parent=5 // pred_fallthru
        _
      %p361 = scmp.le.s32.totalorder 1, %s21
      %p362 = scmp.lt.s32.totalorder %s21, 3
      %p363 = pnand %p361, %p362
      %p364 = pneg %p363
      // Predicated region
      $region49: #{tpu_custom_call.1} parent=5 // pred_check
        _
      $region50: #{tpu_custom_call.1} parent=5 // pred_check_branch
        %366 = sbr.rel (%p363) target = $region52
      $region51: #{tpu_custom_call.1} parent=5 // pred_region
        %s367 = ssub.s32 %s21, 1
        %s368 = sand.u32 %s55, 1
        %s369 = scalar_lea.sflag [#allocation7], %s368
        %s370 = sand.u32 %s55, 1
        %s371 = smul.addr %s370, 32
        %s372 = scalar_lea.vmem [#allocation6], %s371
        // Predicated region
        $region53: #{tpu_custom_call.1} parent=51 // pred_check
          %p373 = pneg %p68
        $region54: #{tpu_custom_call.1} parent=51 // pred_check_branch
          %375 = sbr.rel (%p373) target = $region56
        $region55: #{tpu_custom_call.1} parent=51 // pred_region
          %376 = dma.done %s369, 512
        $region56: #{tpu_custom_call.1} parent=51 // pred_fallthru
          _
        %s377 = sand.u32 %s26, 1
        %s378 = scalar_lea.sflag [#allocation9], %s377
        %s379 = sand.u32 %s83, 1
        %s380 = smul.addr %s379, 32
        %s381 = scalar_lea.vmem [#allocation8], %s380
        // Predicated region
        $region57: #{tpu_custom_call.1} parent=51 // pred_check
          %p382 = pneg %p96
        $region58: #{tpu_custom_call.1} parent=51 // pred_check_branch
          %384 = sbr.rel (%p382) target = $region60
        $region59: #{tpu_custom_call.1} parent=51 // pred_region
          %385 = dma.done %s378, 512
        $region60: #{tpu_custom_call.1} parent=51 // pred_fallthru
          _
        // Predicated region
        $region61: #{tpu_custom_call.1} parent=51 // pred_check
          %p386 = pneg %p117
        $region62: #{tpu_custom_call.1} parent=51 // pred_check_branch
          %388 = sbr.rel (%p386) target = $region64
        $region63: #{tpu_custom_call.1} parent=51 // pred_region
          %389 = dma.done [#allocation9], 512
        $region64: #{tpu_custom_call.1} parent=51 // pred_fallthru
          _
        // Predicated region
        $region65: #{tpu_custom_call.1} parent=51 // pred_check
          %p390 = pneg %p159
        $region66: #{tpu_custom_call.1} parent=51 // pred_check_branch
          %392 = sbr.rel (%p390) target = $region68
        $region67: #{tpu_custom_call.1} parent=51 // pred_region
          %393 = dma.done [#allocation12], 512
        $region68: #{tpu_custom_call.1} parent=51 // pred_fallthru
          _
        // Predicated region
        $region69: #{tpu_custom_call.1} parent=51 // pred_check
          %p394 = pneg %p201
        $region70: #{tpu_custom_call.1} parent=51 // pred_check_branch
          %396 = sbr.rel (%p394) target = $region72
        $region71: #{tpu_custom_call.1} parent=51 // pred_region
          %397 = dma.done [#allocation12], 512
        $region72: #{tpu_custom_call.1} parent=51 // pred_fallthru
          _
        %s398 = sand.u32 %s55, 1
        %s399 = scalar_lea.sflag [#allocation7], %s398
        %s400 = sand.u32 %s55, 1
        %s401 = smul.addr %s400, 32
        %s402 = scalar_lea.vmem [#allocation6], %s401
        %p403 = pneg %p68
        %p404 = pneg %p65
        %s405 = sand.u32 %s26, 1
        %s406 = scalar_lea.sflag [#allocation9], %s405
        %s407 = sand.u32 %s83, 1
        %s408 = smul.addr %s407, 32
        %s409 = scalar_lea.vmem [#allocation8], %s408
        %p410 = pneg %p96
        %p411 = pneg %p93
        %p412 = pneg %p117
        %p413 = pneg %p114
        %p414 = pneg %p138
        %p415 = pneg %p135
        %p416 = pneg %p159
        %p417 = pneg %p156
        %p418 = pneg %p180
        %p419 = pneg %p177
        %p420 = pneg %p201
        %p421 = pneg %p198
        %p422 = pneg %p222
        %p423 = pneg %p219
        %p424 = pneg %p250
        %p425 = pneg %p247
        %s426 = smul.u32 8, %s32
        %p427 = scmp.lt.s32.totalorder %s31, 1
        %s428 = scalar_select %p427, %s31, 1
        %p429 = scmp.lt.s32.totalorder %s426, 7
        %s430 = scalar_select %p429, %s426, 7
        %s431 = smul.addr %s428, 8
        %s432 = sadd.s32 %s430, %s431
        %s433 = smul.addr %s432, 8
        %s434 = scalar_lea.vmem %s8, %s433
        %s435 = smul.u32 8, %s32
        %p436 = scmp.lt.s32.totalorder %s31, 1
        %s437 = scalar_select %p436, %s31, 1
        %p438 = scmp.lt.s32.totalorder %s435, 7
        %s439 = scalar_select %p438, %s435, 7
        %s440 = smul.addr %s437, 8
        %s441 = sadd.s32 %s439, %s440
        %s442 = smul.addr %s441, 8
        %s443 = scalar_lea.vmem %s8, %s442
        %s444 = smul.u32 8, %s32
        %p445 = scmp.eq.s32.totalorder %s33, 0
        // Predicated region
        $region73: #{tpu_custom_call.1} parent=51 // pred_check
          %p446 = pneg %p445
        $region74: #{tpu_custom_call.1} parent=51 // pred_check_branch
          %448 = sbr.rel (%p446) target = $region76
        $region75: #{tpu_custom_call.1} parent=51 // pred_region
          %v449 = vld [vmem:[%s372] sm:$0xff]
          %v450 = vld [vmem:[%s372 + $0x8] sm:$0xff]
          %v451 = vld [vmem:[%s372 + $0x10] sm:$0xff]
          %v452 = vld [vmem:[%s372 + $0x18] sm:$0xff]
          %453 = vxpose.xlu0.b32.start [1/16] %v449, 128
          %454 = vxpose.xlu0.b32.cont [2/16] %v450, 128
          %455 = vxpose.xlu0.b32.cont [3/16] %v451, 128
          %456 = vxpose.xlu0.b32.cont [4/16] %v452, 128
          %457 = vxpose.xlu0.b32.cont [5/16] 0.0, 128
          %458 = vxpose.xlu0.b32.cont [6/16] 0.0, 128
          %459 = vxpose.xlu0.b32.cont [7/16] 0.0, 128
          %460 = vxpose.xlu0.b32.cont [8/16] 0.0, 128
          %461 = vxpose.xlu0.b32.cont [9/16] 0.0, 128
          %462 = vxpose.xlu0.b32.cont [10/16] 0.0, 128
          %463 = vxpose.xlu0.b32.cont [11/16] 0.0, 128
          %464 = vxpose.xlu0.b32.cont [12/16] 0.0, 128
          %465 = vxpose.xlu0.b32.cont [13/16] 0.0, 128
          %466 = vxpose.xlu0.b32.cont [14/16] 0.0, 128
          %467 = vxpose.xlu0.b32.cont [15/16] 0.0, 128
          %468 = vxpose.xlu0.b32.end [16/16] 0.0, 128
          %v469 = vpop.trf.xlu0
          %v470 = vpop.trf.xlu0
          %v471 = vpop.trf.xlu0
          %v472 = vpop.trf.xlu0
          %v473 = vpop.trf.xlu0
          %v474 = vpop.trf.xlu0
          %v475 = vpop.trf.xlu0
          %v476 = vpop.trf.xlu0
          %v477 = vpop.trf.xlu0
          %v478 = vpop.trf.xlu0
          %v479 = vpop.trf.xlu0
          %v480 = vpop.trf.xlu0
          %v481 = vpop.trf.xlu0
          %v482 = vpop.trf.xlu0
          %v483 = vpop.trf.xlu0
          %v484 = vpop.trf.xlu0
          %v485 = vld [vmem:[#allocation10] sm:$0xff]
          %v486 = vld [vmem:[#allocation10 + $0x8] sm:$0xff]
          %v487 = vld [vmem:[#allocation10 + $0x10] sm:$0xff]
          %v488 = vld [vmem:[#allocation10 + $0x18] sm:$0xff]
          %v489 = vld [vmem:[%s3] sm:$0x1]
          %v491 = vlaneseq
          %v492 = vshrl.u32 %v491, 7
          %v493 = vsub.s32 0, %v492
          %v494 = vrot.slane %v489, %v493
          %vm496 = vcmask 261120
          %v498 = vsel %vm496, %v469, 0
          %v501 = vsel %vm496, %v470, 0
          %v504 = vsel %vm496, %v471, 0
          %v507 = vsel %vm496, %v472, 0
          %v510 = vsel %vm496, %v473, 0
          %v513 = vsel %vm496, %v474, 0
          %v516 = vsel %vm496, %v475, 0
          %v519 = vsel %vm496, %v476, 0
          %521 = vmatprep.subr.mxu0 0.0
          %522 = vmatpush1.msra.mxu0 %v485
          %523 = vmatprep.subr.mxu0 0.0
          %524 = vmatpush1.msra.mxu0 %v486
          %525 = vmatprep.subr.mxu0 0.0
          %526 = vmatpush1.msra.mxu0 %v487
          %527 = vmatprep.subr.mxu0 0.0
          %528 = vmatpush1.msra.mxu0 %v488
          %529 = vmatprep.subr.mxu0 0.0
          %530 = vmatpush1.msra.mxu0 0.0
          %531 = vmatprep.subr.mxu0 0.0
          %532 = vmatpush1.msra.mxu0 0.0
          %533 = vmatprep.subr.mxu0 0.0
          %534 = vmatpush1.msra.mxu0 0.0
          %535 = vmatprep.subr.mxu0 0.0
          %536 = vmatpush1.msra.mxu0 0.0
          %537 = vmatprep.subr.mxu0 0.0
          %538 = vmatpush1.msra.mxu0 0.0
          %539 = vmatprep.subr.mxu0 0.0
          %540 = vmatpush1.msra.mxu0 0.0
          %541 = vmatprep.subr.mxu0 0.0
          %542 = vmatpush1.msra.mxu0 0.0
          %543 = vmatprep.subr.mxu0 0.0
          %544 = vmatpush1.msra.mxu0 0.0
          %545 = vmatprep.subr.mxu0 0.0
          %546 = vmatpush1.msra.mxu0 0.0
          %547 = vmatprep.subr.mxu0 0.0
          %548 = vmatpush1.msra.mxu0 0.0
          %549 = vmatprep.subr.mxu0 0.0
          %550 = vmatpush1.msra.mxu0 0.0
          %551 = vmatprep.subr.mxu0 0.0
          %552 = vmatpush1.msra.mxu0 0.0
          %553 = vmatprep.subr.mxu0 0.0
          %554 = vmatpush1.msra.mxu0 0.0
          %555 = vmatprep.subr.mxu0 0.0
          %556 = vmatpush1.msra.mxu0 0.0
          %557 = vmatprep.subr.mxu0 0.0
          %558 = vmatpush1.msra.mxu0 0.0
          %559 = vmatprep.subr.mxu0 0.0
          %560 = vmatpush1.msra.mxu0 0.0
          %561 = vmatprep.subr.mxu0 0.0
          %562 = vmatpush1.msra.mxu0 0.0
          %563 = vmatprep.subr.mxu0 0.0
          %564 = vmatpush1.msra.mxu0 0.0
          %565 = vmatprep.subr.mxu0 0.0
          %566 = vmatpush1.msra.mxu0 0.0
          %567 = vmatprep.subr.mxu0 0.0
          %568 = vmatpush1.msra.mxu0 0.0
          %569 = vmatprep.subr.mxu0 0.0
          %570 = vmatpush1.msra.mxu0 0.0
          %571 = vmatprep.subr.mxu0 0.0
          %572 = vmatpush1.msra.mxu0 0.0
          %573 = vmatprep.subr.mxu0 0.0
          %574 = vmatpush1.msra.mxu0 0.0
          %575 = vmatprep.subr.mxu0 0.0
          %576 = vmatpush1.msra.mxu0 0.0
          %577 = vmatprep.subr.mxu0 0.0
          %578 = vmatpush1.msra.mxu0 0.0
          %579 = vmatprep.subr.mxu0 0.0
          %580 = vmatpush1.msra.mxu0 0.0
          %581 = vmatprep.subr.mxu0 0.0
          %582 = vmatpush1.msra.mxu0 0.0
          %583 = vmatprep.subr.mxu0 0.0
          %584 = vmatpush1.msra.mxu0 0.0
          %585 = vmatprep.mubr.f32.mxu0 0.0
          %586 = vmatmul.mubr.f32.gmra.mrb[0].mxu0 %v498
          %v587 = vpop.f32.mrb[0].mxu0
          %v588 = vadd.f32 %v494, %v587
          %v589 = vpop.f32.mrb[0].mxu0
          %590 = vmatprep.mubr.f32.mxu0 0.0
          %591 = vmatmul.mubr.f32.gmra.mrb[0].mxu0 %v501
          %v592 = vpop.f32.mrb[0].mxu0
          %v593 = vadd.f32 %v494, %v592
          %v594 = vpop.f32.mrb[0].mxu0
          %595 = vmatprep.mubr.f32.mxu0 0.0
          %596 = vmatmul.mubr.f32.gmra.mrb[0].mxu0 %v504
          %v597 = vpop.f32.mrb[0].mxu0
          %v598 = vadd.f32 %v494, %v597
          %v599 = vpop.f32.mrb[0].mxu0
          %600 = vmatprep.mubr.f32.mxu0 0.0
          %601 = vmatmul.mubr.f32.gmra.mrb[0].mxu0 %v507
          %v602 = vpop.f32.mrb[0].mxu0
          %v603 = vadd.f32 %v494, %v602
          %v604 = vpop.f32.mrb[0].mxu0
          %605 = vmatprep.mubr.f32.mxu0 0.0
          %606 = vmatmul.mubr.f32.gmra.mrb[0].mxu0 %v510
          %v607 = vpop.f32.mrb[0].mxu0
          %v608 = vadd.f32 %v494, %v607
          %v609 = vpop.f32.mrb[0].mxu0
          %610 = vmatprep.mubr.f32.mxu0 0.0
          %611 = vmatmul.mubr.f32.gmra.mrb[0].mxu0 %v513
          %v612 = vpop.f32.mrb[0].mxu0
          %v613 = vadd.f32 %v494, %v612
          %v614 = vpop.f32.mrb[0].mxu0
          %615 = vmatprep.mubr.f32.mxu0 0.0
          %616 = vmatmul.mubr.f32.gmra.mrb[0].mxu0 %v516
          %v617 = vpop.f32.mrb[0].mxu0
          %v618 = vadd.f32 %v494, %v617
          %v619 = vpop.f32.mrb[0].mxu0
          %620 = vmatprep.mubr.f32.mxu0 0.0
          %621 = vmatmul.mubr.f32.gmra.mrb[0].mxu0 %v519
          %v622 = vpop.f32.mrb[0].mxu0
          %v623 = vadd.f32 %v494, %v622
          %v624 = vpop.f32.mrb[0].mxu0
          %625 = vdwg.mxu0
          %626 = vst.msk [vmem:[#allocation2] sm:$0xff] %vm496, %v588
          %627 = vst.msk [vmem:[#allocation2 + $0x8] sm:$0xff] %vm496, %v593
          %628 = vst.msk [vmem:[#allocation2 + $0x10] sm:$0xff] %vm496, %v598
          %629 = vst.msk [vmem:[#allocation2 + $0x18] sm:$0xff] %vm496, %v603
          %630 = vst.msk [vmem:[#allocation2 + $0x20] sm:$0xff] %vm496, %v608
          %631 = vst.msk [vmem:[#allocation2 + $0x28] sm:$0xff] %vm496, %v613
          %632 = vst.msk [vmem:[#allocation2 + $0x30] sm:$0xff] %vm496, %v618
          %633 = vst.msk [vmem:[#allocation2 + $0x38] sm:$0xff] %vm496, %v623
          %vm634 = vcmask 7168
          %635 = vst.msk [vmem:[#allocation3] sm:$0xff] %vm634, -inf
          %636 = vst.msk [vmem:[#allocation3 + $0x8] sm:$0xff] %vm634, -inf
          %637 = vst.msk [vmem:[#allocation3 + $0x10] sm:$0xff] %vm634, -inf
          %638 = vst.msk [vmem:[#allocation3 + $0x18] sm:$0xff] %vm634, -inf
          %639 = vst.msk [vmem:[#allocation3 + $0x20] sm:$0xff] %vm634, -inf
          %640 = vst.msk [vmem:[#allocation3 + $0x28] sm:$0xff] %vm634, -inf
          %641 = vst.msk [vmem:[#allocation3 + $0x30] sm:$0xff] %vm634, -inf
          %642 = vst.msk [vmem:[#allocation3 + $0x38] sm:$0xff] %vm634, -inf
          %643 = vst.msk [vmem:[#allocation4] sm:$0xff] %vm634, 0.0
          %644 = vst.msk [vmem:[#allocation4 + $0x8] sm:$0xff] %vm634, 0.0
          %645 = vst.msk [vmem:[#allocation4 + $0x10] sm:$0xff] %vm634, 0.0
          %646 = vst.msk [vmem:[#allocation4 + $0x18] sm:$0xff] %vm634, 0.0
          %647 = vst.msk [vmem:[#allocation4 + $0x20] sm:$0xff] %vm634, 0.0
          %648 = vst.msk [vmem:[#allocation4 + $0x28] sm:$0xff] %vm634, 0.0
          %649 = vst.msk [vmem:[#allocation4 + $0x30] sm:$0xff] %vm634, 0.0
          %650 = vst.msk [vmem:[#allocation4 + $0x38] sm:$0xff] %vm634, 0.0
          %651 = vst.msk [vmem:[#allocation5] sm:$0xff] %vm496, 0.0
          %652 = vst.msk [vmem:[#allocation5 + $0x8] sm:$0xff] %vm496, 0.0
          %653 = vst.msk [vmem:[#allocation5 + $0x10] sm:$0xff] %vm496, 0.0
          %654 = vst.msk [vmem:[#allocation5 + $0x18] sm:$0xff] %vm496, 0.0
          %655 = vst.msk [vmem:[#allocation5 + $0x20] sm:$0xff] %vm496, 0.0
          %656 = vst.msk [vmem:[#allocation5 + $0x28] sm:$0xff] %vm496, 0.0
          %657 = vst.msk [vmem:[#allocation5 + $0x30] sm:$0xff] %vm496, 0.0
          %658 = vst.msk [vmem:[#allocation5 + $0x38] sm:$0xff] %vm496, 0.0
        $region76: #{tpu_custom_call.1} parent=51 // pred_fallthru
          _
        %v659 = vld [vmem:[%s381] sm:$0xff]
        %v660 = vld [vmem:[%s381 + $0x8] sm:$0xff]
        %v661 = vld [vmem:[%s381 + $0x10] sm:$0xff]
        %v662 = vld [vmem:[%s381 + $0x18] sm:$0xff]
        %663 = vxpose.xlu0.b32.start [1/16] %v659, 128
        %664 = vxpose.xlu0.b32.cont [2/16] %v660, 128
        %665 = vxpose.xlu0.b32.cont [3/16] %v661, 128
        %666 = vxpose.xlu0.b32.cont [4/16] %v662, 128
        %667 = vxpose.xlu0.b32.cont [5/16] 0.0, 128
        %668 = vxpose.xlu0.b32.cont [6/16] 0.0, 128
        %669 = vxpose.xlu0.b32.cont [7/16] 0.0, 128
        %670 = vxpose.xlu0.b32.cont [8/16] 0.0, 128
        %671 = vxpose.xlu0.b32.cont [9/16] 0.0, 128
        %672 = vxpose.xlu0.b32.cont [10/16] 0.0, 128
        %673 = vxpose.xlu0.b32.cont [11/16] 0.0, 128
        %674 = vxpose.xlu0.b32.cont [12/16] 0.0, 128
        %675 = vxpose.xlu0.b32.cont [13/16] 0.0, 128
        %676 = vxpose.xlu0.b32.cont [14/16] 0.0, 128
        %677 = vxpose.xlu0.b32.cont [15/16] 0.0, 128
        %678 = vxpose.xlu0.b32.end [16/16] 0.0, 128
        %v679 = vpop.trf.xlu0
        %v680 = vpop.trf.xlu0
        %v681 = vpop.trf.xlu0
        %v682 = vpop.trf.xlu0
        %v683 = vpop.trf.xlu0
        %v684 = vpop.trf.xlu0
        %v685 = vpop.trf.xlu0
        %v686 = vpop.trf.xlu0
        %v687 = vpop.trf.xlu0
        %v688 = vpop.trf.xlu0
        %v689 = vpop.trf.xlu0
        %v690 = vpop.trf.xlu0
        %v691 = vpop.trf.xlu0
        %v692 = vpop.trf.xlu0
        %v693 = vpop.trf.xlu0
        %v694 = vpop.trf.xlu0
        %v695 = vld [vmem:[#allocation11] sm:$0xff]
        %v696 = vld [vmem:[#allocation11 + $0x8] sm:$0xff]
        %v697 = vld [vmem:[#allocation11 + $0x10] sm:$0xff]
        %v698 = vld [vmem:[#allocation11 + $0x18] sm:$0xff]
        %v699 = vld [vmem:[%s5] sm:$0x1]
        %v701 = vlaneseq
        %v702 = vshrl.u32 %v701, 7
        %v703 = vsub.s32 0, %v702
        %v704 = vrot.slane %v699, %v703
        %vm706 = vcmask 261120
        %v708 = vsel %vm706, %v679, 0
        %v711 = vsel %vm706, %v680, 0
        %v714 = vsel %vm706, %v681, 0
        %v717 = vsel %vm706, %v682, 0
        %v720 = vsel %vm706, %v683, 0
        %v723 = vsel %vm706, %v684, 0
        %v726 = vsel %vm706, %v685, 0
        %v729 = vsel %vm706, %v686, 0
        %731 = vmatprep.subr.mxu0 0.0
        %732 = vmatpush1.msra.mxu0 %v695
        %733 = vmatprep.subr.mxu0 0.0
        %734 = vmatpush1.msra.mxu0 %v696
        %735 = vmatprep.subr.mxu0 0.0
        %736 = vmatpush1.msra.mxu0 %v697
        %737 = vmatprep.subr.mxu0 0.0
        %738 = vmatpush1.msra.mxu0 %v698
        %739 = vmatprep.subr.mxu0 0.0
        %740 = vmatpush1.msra.mxu0 0.0
        %741 = vmatprep.subr.mxu0 0.0
        %742 = vmatpush1.msra.mxu0 0.0
        %743 = vmatprep.subr.mxu0 0.0
        %744 = vmatpush1.msra.mxu0 0.0
        %745 = vmatprep.subr.mxu0 0.0
        %746 = vmatpush1.msra.mxu0 0.0
        %747 = vmatprep.subr.mxu0 0.0
        %748 = vmatpush1.msra.mxu0 0.0
        %749 = vmatprep.subr.mxu0 0.0
        %750 = vmatpush1.msra.mxu0 0.0
        %751 = vmatprep.subr.mxu0 0.0
        %752 = vmatpush1.msra.mxu0 0.0
        %753 = vmatprep.subr.mxu0 0.0
        %754 = vmatpush1.msra.mxu0 0.0
        %755 = vmatprep.subr.mxu0 0.0
        %756 = vmatpush1.msra.mxu0 0.0
        %757 = vmatprep.subr.mxu0 0.0
        %758 = vmatpush1.msra.mxu0 0.0
        %759 = vmatprep.subr.mxu0 0.0
        %760 = vmatpush1.msra.mxu0 0.0
        %761 = vmatprep.subr.mxu0 0.0
        %762 = vmatpush1.msra.mxu0 0.0
        %763 = vmatprep.subr.mxu0 0.0
        %764 = vmatpush1.msra.mxu0 0.0
        %765 = vmatprep.subr.mxu0 0.0
        %766 = vmatpush1.msra.mxu0 0.0
        %767 = vmatprep.subr.mxu0 0.0
        %768 = vmatpush1.msra.mxu0 0.0
        %769 = vmatprep.subr.mxu0 0.0
        %770 = vmatpush1.msra.mxu0 0.0
        %771 = vmatprep.subr.mxu0 0.0
        %772 = vmatpush1.msra.mxu0 0.0
        %773 = vmatprep.subr.mxu0 0.0
        %774 = vmatpush1.msra.mxu0 0.0
        %775 = vmatprep.subr.mxu0 0.0
        %776 = vmatpush1.msra.mxu0 0.0
        %777 = vmatprep.subr.mxu0 0.0
        %778 = vmatpush1.msra.mxu0 0.0
        %779 = vmatprep.subr.mxu0 0.0
        %780 = vmatpush1.msra.mxu0 0.0
        %781 = vmatprep.subr.mxu0 0.0
        %782 = vmatpush1.msra.mxu0 0.0
        %783 = vmatprep.subr.mxu0 0.0
        %784 = vmatpush1.msra.mxu0 0.0
        %785 = vmatprep.subr.mxu0 0.0
        %786 = vmatpush1.msra.mxu0 0.0
        %787 = vmatprep.subr.mxu0 0.0
        %788 = vmatpush1.msra.mxu0 0.0
        %789 = vmatprep.subr.mxu0 0.0
        %790 = vmatpush1.msra.mxu0 0.0
        %791 = vmatprep.subr.mxu0 0.0
        %792 = vmatpush1.msra.mxu0 0.0
        %793 = vmatprep.subr.mxu0 0.0
        %794 = vmatpush1.msra.mxu0 0.0
        %795 = vmatprep.mubr.f32.mxu0 0.0
        %796 = vmatmul.mubr.f32.gmra.mrb[0].mxu0 %v708
        %v797 = vpop.f32.mrb[0].mxu0
        %v798 = vadd.f32 %v704, %v797
        %v799 = vpop.f32.mrb[0].mxu0
        %800 = vmatprep.mubr.f32.mxu0 0.0
        %801 = vmatmul.mubr.f32.gmra.mrb[0].mxu0 %v711
        %v802 = vpop.f32.mrb[0].mxu0
        %v803 = vadd.f32 %v704, %v802
        %v804 = vpop.f32.mrb[0].mxu0
        %805 = vmatprep.mubr.f32.mxu0 0.0
        %806 = vmatmul.mubr.f32.gmra.mrb[0].mxu0 %v714
        %v807 = vpop.f32.mrb[0].mxu0
        %v808 = vadd.f32 %v704, %v807
        %v809 = vpop.f32.mrb[0].mxu0
        %810 = vmatprep.mubr.f32.mxu0 0.0
        %811 = vmatmul.mubr.f32.gmra.mrb[0].mxu0 %v717
        %v812 = vpop.f32.mrb[0].mxu0
        %v813 = vadd.f32 %v704, %v812
        %v814 = vpop.f32.mrb[0].mxu0
        %815 = vmatprep.mubr.f32.mxu0 0.0
        %816 = vmatmul.mubr.f32.gmra.mrb[0].mxu0 %v720
        %v817 = vpop.f32.mrb[0].mxu0
        %v818 = vadd.f32 %v704, %v817
        %v819 = vpop.f32.mrb[0].mxu0
        %820 = vmatprep.mubr.f32.mxu0 0.0
        %821 = vmatmul.mubr.f32.gmra.mrb[0].mxu0 %v723
        %v822 = vpop.f32.mrb[0].mxu0
        %v823 = vadd.f32 %v704, %v822
        %v824 = vpop.f32.mrb[0].mxu0
        %825 = vmatprep.mubr.f32.mxu0 0.0
        %826 = vmatmul.mubr.f32.gmra.mrb[0].mxu0 %v726
        %v827 = vpop.f32.mrb[0].mxu0
        %v828 = vadd.f32 %v704, %v827
        %v829 = vpop.f32.mrb[0].mxu0
        %830 = vmatprep.mubr.f32.mxu0 0.0
        %831 = vmatmul.mubr.f32.gmra.mrb[0].mxu0 %v729
        %v832 = vpop.f32.mrb[0].mxu0
        %v833 = vadd.f32 %v704, %v832
        %v834 = vpop.f32.mrb[0].mxu0
        %835 = vdwg.mxu0
        %v836 = vld [vmem:[#allocation13] sm:$0xff]
        %v837 = vld [vmem:[#allocation13 + $0x8] sm:$0xff]
        %v838 = vld [vmem:[#allocation13 + $0x10] sm:$0xff]
        %v839 = vld [vmem:[#allocation13 + $0x18] sm:$0xff]
        %v840 = vld [vmem:[%s7] sm:$0x1]
        %v842 = vlaneseq
        %v843 = vshrl.u32 %v842, 7
        %v844 = vsub.s32 0, %v843
        %v845 = vrot.slane %v840, %v844
        %847 = vmatprep.subr.mxu0 0.0
        %848 = vmatpush1.msra.mxu0 %v836
        %849 = vmatprep.subr.mxu0 0.0
        %850 = vmatpush1.msra.mxu0 %v837
        %851 = vmatprep.subr.mxu0 0.0
        %852 = vmatpush1.msra.mxu0 %v838
        %853 = vmatprep.subr.mxu0 0.0
        %854 = vmatpush1.msra.mxu0 %v839
        %855 = vmatprep.subr.mxu0 0.0
        %856 = vmatpush1.msra.mxu0 0.0
        %857 = vmatprep.subr.mxu0 0.0
        %858 = vmatpush1.msra.mxu0 0.0
        %859 = vmatprep.subr.mxu0 0.0
        %860 = vmatpush1.msra.mxu0 0.0
        %861 = vmatprep.subr.mxu0 0.0
        %862 = vmatpush1.msra.mxu0 0.0
        %863 = vmatprep.subr.mxu0 0.0
        %864 = vmatpush1.msra.mxu0 0.0
        %865 = vmatprep.subr.mxu0 0.0
        %866 = vmatpush1.msra.mxu0 0.0
        %867 = vmatprep.subr.mxu0 0.0
        %868 = vmatpush1.msra.mxu0 0.0
        %869 = vmatprep.subr.mxu0 0.0
        %870 = vmatpush1.msra.mxu0 0.0
        %871 = vmatprep.subr.mxu0 0.0
        %872 = vmatpush1.msra.mxu0 0.0
        %873 = vmatprep.subr.mxu0 0.0
        %874 = vmatpush1.msra.mxu0 0.0
        %875 = vmatprep.subr.mxu0 0.0
        %876 = vmatpush1.msra.mxu0 0.0
        %877 = vmatprep.subr.mxu0 0.0
        %878 = vmatpush1.msra.mxu0 0.0
        %879 = vmatprep.subr.mxu0 0.0
        %880 = vmatpush1.msra.mxu0 0.0
        %881 = vmatprep.subr.mxu0 0.0
        %882 = vmatpush1.msra.mxu0 0.0
        %883 = vmatprep.subr.mxu0 0.0
        %884 = vmatpush1.msra.mxu0 0.0
        %885 = vmatprep.subr.mxu0 0.0
        %886 = vmatpush1.msra.mxu0 0.0
        %887 = vmatprep.subr.mxu0 0.0
        %888 = vmatpush1.msra.mxu0 0.0
        %889 = vmatprep.subr.mxu0 0.0
        %890 = vmatpush1.msra.mxu0 0.0
        %891 = vmatprep.subr.mxu0 0.0
        %892 = vmatpush1.msra.mxu0 0.0
        %893 = vmatprep.subr.mxu0 0.0
        %894 = vmatpush1.msra.mxu0 0.0
        %895 = vmatprep.subr.mxu0 0.0
        %896 = vmatpush1.msra.mxu0 0.0
        %897 = vmatprep.subr.mxu0 0.0
        %898 = vmatpush1.msra.mxu0 0.0
        %899 = vmatprep.subr.mxu0 0.0
        %900 = vmatpush1.msra.mxu0 0.0
        %901 = vmatprep.subr.mxu0 0.0
        %902 = vmatpush1.msra.mxu0 0.0
        %903 = vmatprep.subr.mxu0 0.0
        %904 = vmatpush1.msra.mxu0 0.0
        %905 = vmatprep.subr.mxu0 0.0
        %906 = vmatpush1.msra.mxu0 0.0
        %907 = vmatprep.subr.mxu0 0.0
        %908 = vmatpush1.msra.mxu0 0.0
        %909 = vmatprep.subr.mxu0 0.0
        %910 = vmatpush1.msra.mxu0 0.0
        %911 = vmatprep.mubr.f32.mxu0 0.0
        %912 = vmatmul.mubr.f32.gmra.mrb[0].mxu0 %v708
        %v913 = vpop.f32.mrb[0].mxu0
        %v914 = vadd.f32 %v845, %v913
        %v915 = vpop.f32.mrb[0].mxu0
        %916 = vmatprep.mubr.f32.mxu0 0.0
        %917 = vmatmul.mubr.f32.gmra.mrb[0].mxu0 %v711
        %v918 = vpop.f32.mrb[0].mxu0
        %v919 = vadd.f32 %v845, %v918
        %v920 = vpop.f32.mrb[0].mxu0
        %921 = vmatprep.mubr.f32.mxu0 0.0
        %922 = vmatmul.mubr.f32.gmra.mrb[0].mxu0 %v714
        %v923 = vpop.f32.mrb[0].mxu0
        %v924 = vadd.f32 %v845, %v923
        %v925 = vpop.f32.mrb[0].mxu0
        %926 = vmatprep.mubr.f32.mxu0 0.0
        %927 = vmatmul.mubr.f32.gmra.mrb[0].mxu0 %v717
        %v928 = vpop.f32.mrb[0].mxu0
        %v929 = vadd.f32 %v845, %v928
        %v930 = vpop.f32.mrb[0].mxu0
        %931 = vmatprep.mubr.f32.mxu0 0.0
        %932 = vmatmul.mubr.f32.gmra.mrb[0].mxu0 %v720
        %v933 = vpop.f32.mrb[0].mxu0
        %v934 = vadd.f32 %v845, %v933
        %v935 = vpop.f32.mrb[0].mxu0
        %936 = vmatprep.mubr.f32.mxu0 0.0
        %937 = vmatmul.mubr.f32.gmra.mrb[0].mxu0 %v723
        %v938 = vpop.f32.mrb[0].mxu0
        %v939 = vadd.f32 %v845, %v938
        %v940 = vpop.f32.mrb[0].mxu0
        %941 = vmatprep.mubr.f32.mxu0 0.0
        %942 = vmatmul.mubr.f32.gmra.mrb[0].mxu0 %v726
        %v943 = vpop.f32.mrb[0].mxu0
        %v944 = vadd.f32 %v845, %v943
        %v945 = vpop.f32.mrb[0].mxu0
        %946 = vmatprep.mubr.f32.mxu0 0.0
        %947 = vmatmul.mubr.f32.gmra.mrb[0].mxu0 %v729
        %v948 = vpop.f32.mrb[0].mxu0
        %v949 = vadd.f32 %v845, %v948
        %v950 = vpop.f32.mrb[0].mxu0
        %951 = vdwg.mxu0
        %v952 = vld [vmem:[#allocation2] sm:$0xff]
        %v953 = vld [vmem:[#allocation2 + $0x8] sm:$0xff]
        %v954 = vld [vmem:[#allocation2 + $0x10] sm:$0xff]
        %v955 = vld [vmem:[#allocation2 + $0x18] sm:$0xff]
        %v956 = vld [vmem:[#allocation2 + $0x20] sm:$0xff]
        %v957 = vld [vmem:[#allocation2 + $0x28] sm:$0xff]
        %v958 = vld [vmem:[#allocation2 + $0x30] sm:$0xff]
        %v959 = vld [vmem:[#allocation2 + $0x38] sm:$0xff]
        %v961 = vsel %vm706, %v952, 0
        %v964 = vsel %vm706, %v953, 0
        %v967 = vsel %vm706, %v954, 0
        %v970 = vsel %vm706, %v955, 0
        %v973 = vsel %vm706, %v956, 0
        %v976 = vsel %vm706, %v957, 0
        %v979 = vsel %vm706, %v958, 0
        %v982 = vsel %vm706, %v959, 0
        %v985 = vsel %vm706, %v798, 0
        %v988 = vsel %vm706, %v803, 0
        %v991 = vsel %vm706, %v808, 0
        %v994 = vsel %vm706, %v813, 0
        %v997 = vsel %vm706, %v818, 0
        %v1000 = vsel %vm706, %v823, 0
        %v1003 = vsel %vm706, %v828, 0
        %v1006 = vsel %vm706, %v833, 0
        %1008 = vmatprep.subr.mxu0 0.0
        %1009 = vmatpush1.xpose.msra.mxu0 %v985
        %1010 = vmatprep.subr.mxu0 0.0
        %1011 = vmatpush1.xpose.msra.mxu0 %v988
        %1012 = vmatprep.subr.mxu0 0.0
        %1013 = vmatpush1.xpose.msra.mxu0 %v991
        %1014 = vmatprep.subr.mxu0 0.0
        %1015 = vmatpush1.xpose.msra.mxu0 %v994
        %1016 = vmatprep.subr.mxu0 0.0
        %1017 = vmatpush1.xpose.msra.mxu0 %v997
        %1018 = vmatprep.subr.mxu0 0.0
        %1019 = vmatpush1.xpose.msra.mxu0 %v1000
        %1020 = vmatprep.subr.mxu0 0.0
        %1021 = vmatpush1.xpose.msra.mxu0 %v1003
        %1022 = vmatprep.subr.mxu0 0.0
        %1023 = vmatpush1.xpose.msra.mxu0 %v1006
        %1024 = vmatprep.subr.mxu0 0.0
        %1025 = vmatpush1.xpose.msra.mxu0 0.0
        %1026 = vmatprep.subr.mxu0 0.0
        %1027 = vmatpush1.xpose.msra.mxu0 0.0
        %1028 = vmatprep.subr.mxu0 0.0
        %1029 = vmatpush1.xpose.msra.mxu0 0.0
        %1030 = vmatprep.subr.mxu0 0.0
        %1031 = vmatpush1.xpose.msra.mxu0 0.0
        %1032 = vmatprep.subr.mxu0 0.0
        %1033 = vmatpush1.xpose.msra.mxu0 0.0
        %1034 = vmatprep.subr.mxu0 0.0
        %1035 = vmatpush1.xpose.msra.mxu0 0.0
        %1036 = vmatprep.subr.mxu0 0.0
        %1037 = vmatpush1.xpose.msra.mxu0 0.0
        %1038 = vmatprep.subr.mxu0 0.0
        %1039 = vmatpush1.xpose.msra.mxu0 0.0
        %1040 = vmatprep.subr.mxu0 0.0
        %1041 = vmatpush1.xpose.msra.mxu0 0.0
        %1042 = vmatprep.subr.mxu0 0.0
        %1043 = vmatpush1.xpose.msra.mxu0 0.0
        %1044 = vmatprep.subr.mxu0 0.0
        %1045 = vmatpush1.xpose.msra.mxu0 0.0
        %1046 = vmatprep.subr.mxu0 0.0
        %1047 = vmatpush1.xpose.msra.mxu0 0.0
        %1048 = vmatprep.subr.mxu0 0.0
        %1049 = vmatpush1.xpose.msra.mxu0 0.0
        %1050 = vmatprep.subr.mxu0 0.0
        %1051 = vmatpush1.xpose.msra.mxu0 0.0
        %1052 = vmatprep.subr.mxu0 0.0
        %1053 = vmatpush1.xpose.msra.mxu0 0.0
        %1054 = vmatprep.subr.mxu0 0.0
        %1055 = vmatpush1.xpose.msra.mxu0 0.0
        %1056 = vmatprep.subr.mxu0 0.0
        %1057 = vmatpush1.xpose.msra.mxu0 0.0
        %1058 = vmatprep.subr.mxu0 0.0
        %1059 = vmatpush1.xpose.msra.mxu0 0.0
        %1060 = vmatprep.subr.mxu0 0.0
        %1061 = vmatpush1.xpose.msra.mxu0 0.0
        %1062 = vmatprep.subr.mxu0 0.0
        %1063 = vmatpush1.xpose.msra.mxu0 0.0
        %1064 = vmatprep.subr.mxu0 0.0
        %1065 = vmatpush1.xpose.msra.mxu0 0.0
        %1066 = vmatprep.subr.mxu0 0.0
        %1067 = vmatpush1.xpose.msra.mxu0 0.0
        %1068 = vmatprep.subr.mxu0 0.0
        %1069 = vmatpush1.xpose.msra.mxu0 0.0
        %1070 = vmatprep.subr.mxu0 0.0
        %1071 = vmatpush1.xpose.msra.mxu0 0.0
        %1072 = vmatprep.mubr.f32.mxu0 0.0
        %1073 = vmatmul.mubr.f32.gmra.mrb[0].mxu0 %v961
        %v1074 = vpop.f32.mrb[0].mxu0
        %v1075 = vadd.f32 0.0, %v1074
        %v1076 = vpop.f32.mrb[0].mxu0
        %1077 = vmatprep.mubr.f32.mxu0 0.0
        %1078 = vmatmul.mubr.f32.gmra.mrb[0].mxu0 %v964
        %v1079 = vpop.f32.mrb[0].mxu0
        %v1080 = vadd.f32 0.0, %v1079
        %v1081 = vpop.f32.mrb[0].mxu0
        %1082 = vmatprep.mubr.f32.mxu0 0.0
        %1083 = vmatmul.mubr.f32.gmra.mrb[0].mxu0 %v967
        %v1084 = vpop.f32.mrb[0].mxu0
        %v1085 = vadd.f32 0.0, %v1084
        %v1086 = vpop.f32.mrb[0].mxu0
        %1087 = vmatprep.mubr.f32.mxu0 0.0
        %1088 = vmatmul.mubr.f32.gmra.mrb[0].mxu0 %v970
        %v1089 = vpop.f32.mrb[0].mxu0
        %v1090 = vadd.f32 0.0, %v1089
        %v1091 = vpop.f32.mrb[0].mxu0
        %1092 = vmatprep.mubr.f32.mxu0 0.0
        %1093 = vmatmul.mubr.f32.gmra.mrb[0].mxu0 %v973
        %v1094 = vpop.f32.mrb[0].mxu0
        %v1095 = vadd.f32 0.0, %v1094
        %v1096 = vpop.f32.mrb[0].mxu0
        %1097 = vmatprep.mubr.f32.mxu0 0.0
        %1098 = vmatmul.mubr.f32.gmra.mrb[0].mxu0 %v976
        %v1099 = vpop.f32.mrb[0].mxu0
        %v1100 = vadd.f32 0.0, %v1099
        %v1101 = vpop.f32.mrb[0].mxu0
        %1102 = vmatprep.mubr.f32.mxu0 0.0
        %1103 = vmatmul.mubr.f32.gmra.mrb[0].mxu0 %v979
        %v1104 = vpop.f32.mrb[0].mxu0
        %v1105 = vadd.f32 0.0, %v1104
        %v1106 = vpop.f32.mrb[0].mxu0
        %1107 = vmatprep.mubr.f32.mxu0 0.0
        %1108 = vmatmul.mubr.f32.gmra.mrb[0].mxu0 %v982
        %v1109 = vpop.f32.mrb[0].mxu0
        %v1110 = vadd.f32 0.0, %v1109
        %v1111 = vpop.f32.mrb[0].mxu0
        %1112 = vdwg.mxu0
        %v1113 = vld [vmem:[#allocation3] sm:$0xff]
        %v1114 = vld [vmem:[#allocation3 + $0x8] sm:$0xff]
        %v1115 = vld [vmem:[#allocation3 + $0x10] sm:$0xff]
        %v1116 = vld [vmem:[#allocation3 + $0x18] sm:$0xff]
        %v1117 = vld [vmem:[#allocation3 + $0x20] sm:$0xff]
        %v1118 = vld [vmem:[#allocation3 + $0x28] sm:$0xff]
        %v1119 = vld [vmem:[#allocation3 + $0x30] sm:$0xff]
        %v1120 = vld [vmem:[#allocation3 + $0x38] sm:$0xff]
        %vm1121 = vcmask 523264
        %v1122 = vsel %vm1121, %v1075, -inf
        %1123 = vmax.xlane.f32.xlu0 %v1122
        %v1124 = vpop.xlane.xlu0 %1123
        %v1125 = vsel %vm1121, %v1080, -inf
        %1126 = vmax.xlane.f32.xlu0 %v1125
        %v1127 = vpop.xlane.xlu0 %1126
        %v1128 = vsel %vm1121, %v1085, -inf
        %1129 = vmax.xlane.f32.xlu0 %v1128
        %v1130 = vpop.xlane.xlu0 %1129
        %v1131 = vsel %vm1121, %v1090, -inf
        %1132 = vmax.xlane.f32.xlu0 %v1131
        %v1133 = vpop.xlane.xlu0 %1132
        %v1134 = vsel %vm1121, %v1095, -inf
        %1135 = vmax.xlane.f32.xlu0 %v1134
        %v1136 = vpop.xlane.xlu0 %1135
        %v1137 = vsel %vm1121, %v1100, -inf
        %1138 = vmax.xlane.f32.xlu0 %v1137
        %v1139 = vpop.xlane.xlu0 %1138
        %v1140 = vsel %vm1121, %v1105, -inf
        %1141 = vmax.xlane.f32.xlu0 %v1140
        %v1142 = vpop.xlane.xlu0 %1141
        %v1143 = vsel %vm1121, %v1110, -inf
        %1144 = vmax.xlane.f32.xlu0 %v1143
        %v1145 = vpop.xlane.xlu0 %1144
        %v1146 = vmax.f32 %v1113, %v1124
        %v1147 = vmax.f32 %v1114, %v1127
        %v1148 = vmax.f32 %v1115, %v1130
        %v1149 = vmax.f32 %v1116, %v1133
        %v1150 = vmax.f32 %v1117, %v1136
        %v1151 = vmax.f32 %v1118, %v1139
        %v1152 = vmax.f32 %v1119, %v1142
        %v1153 = vmax.f32 %v1120, %v1145
        %v1154 = vsub.f32 %v1113, %v1146
        %v1155 = vsub.f32 %v1114, %v1147
        %v1156 = vsub.f32 %v1115, %v1148
        %v1157 = vsub.f32 %v1116, %v1149
        %v1158 = vsub.f32 %v1117, %v1150
        %v1159 = vsub.f32 %v1118, %v1151
        %v1160 = vsub.f32 %v1119, %v1152
        %v1161 = vsub.f32 %v1120, %v1153
        %v1162 = vmul.f32 %v1154, 1.442695
        %v1163 = vpow.pop %v1162
        %v1164 = vmul.f32 %v1155, 1.442695
        %v1165 = vpow.pop %v1164
        %v1166 = vmul.f32 %v1156, 1.442695
        %v1167 = vpow.pop %v1166
        %v1168 = vmul.f32 %v1157, 1.442695
        %v1169 = vpow.pop %v1168
        %v1170 = vmul.f32 %v1158, 1.442695
        %v1171 = vpow.pop %v1170
        %v1172 = vmul.f32 %v1159, 1.442695
        %v1173 = vpow.pop %v1172
        %v1174 = vmul.f32 %v1160, 1.442695
        %v1175 = vpow.pop %v1174
        %v1176 = vmul.f32 %v1161, 1.442695
        %v1177 = vpow.pop %v1176
        %1179 = vset.pattern.permute.xlu0 0
        %1180 = vperm.xlu0 %1179, %v1146
        %v1181 = vpop.permute.xlu0 %1180
        %1184 = vset.pattern.permute.xlu0 0
        %1185 = vperm.xlu0 %1184, %v1147
        %v1186 = vpop.permute.xlu0 %1185
        %1189 = vset.pattern.permute.xlu0 0
        %1190 = vperm.xlu0 %1189, %v1148
        %v1191 = vpop.permute.xlu0 %1190
        %1194 = vset.pattern.permute.xlu0 0
        %1195 = vperm.xlu0 %1194, %v1149
        %v1196 = vpop.permute.xlu0 %1195
        %1199 = vset.pattern.permute.xlu0 0
        %1200 = vperm.xlu0 %1199, %v1150
        %v1201 = vpop.permute.xlu0 %1200
        %1204 = vset.pattern.permute.xlu0 0
        %1205 = vperm.xlu0 %1204, %v1151
        %v1206 = vpop.permute.xlu0 %1205
        %1209 = vset.pattern.permute.xlu0 0
        %1210 = vperm.xlu0 %1209, %v1152
        %v1211 = vpop.permute.xlu0 %1210
        %1214 = vset.pattern.permute.xlu0 0
        %1215 = vperm.xlu0 %1214, %v1153
        %v1216 = vpop.permute.xlu0 %1215
        %v1218 = vsub.f32 %v1075, %v1181
        %v1219 = vsub.f32 %v1080, %v1186
        %v1220 = vsub.f32 %v1085, %v1191
        %v1221 = vsub.f32 %v1090, %v1196
        %v1222 = vsub.f32 %v1095, %v1201
        %v1223 = vsub.f32 %v1100, %v1206
        %v1224 = vsub.f32 %v1105, %v1211
        %v1225 = vsub.f32 %v1110, %v1216
        %v1226 = vmul.f32 %v1218, 1.442695
        %v1227 = vpow.pop %v1226
        %v1228 = vmul.f32 %v1219, 1.442695
        %v1229 = vpow.pop %v1228
        %v1230 = vmul.f32 %v1220, 1.442695
        %v1231 = vpow.pop %v1230
        %v1232 = vmul.f32 %v1221, 1.442695
        %v1233 = vpow.pop %v1232
        %v1234 = vmul.f32 %v1222, 1.442695
        %v1235 = vpow.pop %v1234
        %v1236 = vmul.f32 %v1223, 1.442695
        %v1237 = vpow.pop %v1236
        %v1238 = vmul.f32 %v1224, 1.442695
        %v1239 = vpow.pop %v1238
        %v1240 = vmul.f32 %v1225, 1.442695
        %v1241 = vpow.pop %v1240
        %v1242 = vld [vmem:[#allocation4] sm:$0xff]
        %v1243 = vld [vmem:[#allocation4 + $0x8] sm:$0xff]
        %v1244 = vld [vmem:[#allocation4 + $0x10] sm:$0xff]
        %v1245 = vld [vmem:[#allocation4 + $0x18] sm:$0xff]
        %v1246 = vld [vmem:[#allocation4 + $0x20] sm:$0xff]
        %v1247 = vld [vmem:[#allocation4 + $0x28] sm:$0xff]
        %v1248 = vld [vmem:[#allocation4 + $0x30] sm:$0xff]
        %v1249 = vld [vmem:[#allocation4 + $0x38] sm:$0xff]
        %v1250 = vmul.f32 %v1163, %v1242
        %v1251 = vmul.f32 %v1165, %v1243
        %v1252 = vmul.f32 %v1167, %v1244
        %v1253 = vmul.f32 %v1169, %v1245
        %v1254 = vmul.f32 %v1171, %v1246
        %v1255 = vmul.f32 %v1173, %v1247
        %v1256 = vmul.f32 %v1175, %v1248
        %v1257 = vmul.f32 %v1177, %v1249
        %v1258 = vsel %vm1121, %v1227, 0.0
        %1259 = vadd.xlane.f32.xlu0 %v1258
        %v1260 = vpop.xlane.xlu0 %1259
        %v1261 = vsel %vm1121, %v1229, 0.0
        %1262 = vadd.xlane.f32.xlu0 %v1261
        %v1263 = vpop.xlane.xlu0 %1262
        %v1264 = vsel %vm1121, %v1231, 0.0
        %1265 = vadd.xlane.f32.xlu0 %v1264
        %v1266 = vpop.xlane.xlu0 %1265
        %v1267 = vsel %vm1121, %v1233, 0.0
        %1268 = vadd.xlane.f32.xlu0 %v1267
        %v1269 = vpop.xlane.xlu0 %1268
        %v1270 = vsel %vm1121, %v1235, 0.0
        %1271 = vadd.xlane.f32.xlu0 %v1270
        %v1272 = vpop.xlane.xlu0 %1271
        %v1273 = vsel %vm1121, %v1237, 0.0
        %1274 = vadd.xlane.f32.xlu0 %v1273
        %v1275 = vpop.xlane.xlu0 %1274
        %v1276 = vsel %vm1121, %v1239, 0.0
        %1277 = vadd.xlane.f32.xlu0 %v1276
        %v1278 = vpop.xlane.xlu0 %1277
        %v1279 = vsel %vm1121, %v1241, 0.0
        %1280 = vadd.xlane.f32.xlu0 %v1279
        %v1281 = vpop.xlane.xlu0 %1280
        %v1282 = vadd.f32 %v1250, %v1260
        %v1283 = vadd.f32 %v1251, %v1263
        %v1284 = vadd.f32 %v1252, %v1266
        %v1285 = vadd.f32 %v1253, %v1269
        %v1286 = vadd.f32 %v1254, %v1272
        %v1287 = vadd.f32 %v1255, %v1275
        %v1288 = vadd.f32 %v1256, %v1278
        %v1289 = vadd.f32 %v1257, %v1281
        %vm1290 = vcmask 7168
        %1291 = vst.msk [vmem:[#allocation4] sm:$0xff] %vm1290, %v1282
        %1292 = vst.msk [vmem:[#allocation4 + $0x8] sm:$0xff] %vm1290, %v1283
        %1293 = vst.msk [vmem:[#allocation4 + $0x10] sm:$0xff] %vm1290, %v1284
        %1294 = vst.msk [vmem:[#allocation4 + $0x18] sm:$0xff] %vm1290, %v1285
        %1295 = vst.msk [vmem:[#allocation4 + $0x20] sm:$0xff] %vm1290, %v1286
        %1296 = vst.msk [vmem:[#allocation4 + $0x28] sm:$0xff] %vm1290, %v1287
        %1297 = vst.msk [vmem:[#allocation4 + $0x30] sm:$0xff] %vm1290, %v1288
        %1298 = vst.msk [vmem:[#allocation4 + $0x38] sm:$0xff] %vm1290, %v1289
        %v1299 = vld [vmem:[#allocation5] sm:$0xff]
        %v1300 = vld [vmem:[#allocation5 + $0x8] sm:$0xff]
        %v1301 = vld [vmem:[#allocation5 + $0x10] sm:$0xff]
        %v1302 = vld [vmem:[#allocation5 + $0x18] sm:$0xff]
        %v1303 = vld [vmem:[#allocation5 + $0x20] sm:$0xff]
        %v1304 = vld [vmem:[#allocation5 + $0x28] sm:$0xff]
        %v1305 = vld [vmem:[#allocation5 + $0x30] sm:$0xff]
        %v1306 = vld [vmem:[#allocation5 + $0x38] sm:$0xff]
        %1308 = vset.pattern.permute.xlu0 0
        %1309 = vperm.xlu0 %1308, %v1163
        %v1310 = vpop.permute.xlu0 %1309
        %1313 = vset.pattern.permute.xlu0 0
        %1314 = vperm.xlu0 %1313, %v1165
        %v1315 = vpop.permute.xlu0 %1314
        %1318 = vset.pattern.permute.xlu0 0
        %1319 = vperm.xlu0 %1318, %v1167
        %v1320 = vpop.permute.xlu0 %1319
        %1323 = vset.pattern.permute.xlu0 0
        %1324 = vperm.xlu0 %1323, %v1169
        %v1325 = vpop.permute.xlu0 %1324
        %1328 = vset.pattern.permute.xlu0 0
        %1329 = vperm.xlu0 %1328, %v1171
        %v1330 = vpop.permute.xlu0 %1329
        %1333 = vset.pattern.permute.xlu0 0
        %1334 = vperm.xlu0 %1333, %v1173
        %v1335 = vpop.permute.xlu0 %1334
        %1338 = vset.pattern.permute.xlu0 0
        %1339 = vperm.xlu0 %1338, %v1175
        %v1340 = vpop.permute.xlu0 %1339
        %1343 = vset.pattern.permute.xlu0 0
        %1344 = vperm.xlu0 %1343, %v1177
        %v1345 = vpop.permute.xlu0 %1344
        %v1347 = vmul.f32 %v1310, %v1299
        %v1348 = vmul.f32 %v1315, %v1300
        %v1349 = vmul.f32 %v1320, %v1301
        %v1350 = vmul.f32 %v1325, %v1302
        %v1351 = vmul.f32 %v1330, %v1303
        %v1352 = vmul.f32 %v1335, %v1304
        %v1353 = vmul.f32 %v1340, %v1305
        %v1354 = vmul.f32 %v1345, %v1306
        %v1356 = vsel %vm1121, %v1227, 0
        %v1359 = vsel %vm1121, %v1229, 0
        %v1362 = vsel %vm1121, %v1231, 0
        %v1365 = vsel %vm1121, %v1233, 0
        %v1368 = vsel %vm1121, %v1235, 0
        %v1371 = vsel %vm1121, %v1237, 0
        %v1374 = vsel %vm1121, %v1239, 0
        %v1377 = vsel %vm1121, %v1241, 0
        %1379 = vmatprep.subr.mxu0 0.0
        %1380 = vmatpush1.msra.mxu0 %v914
        %1381 = vmatprep.subr.mxu0 0.0
        %1382 = vmatpush1.msra.mxu0 %v919
        %1383 = vmatprep.subr.mxu0 0.0
        %1384 = vmatpush1.msra.mxu0 %v924
        %1385 = vmatprep.subr.mxu0 0.0
        %1386 = vmatpush1.msra.mxu0 %v929
        %1387 = vmatprep.subr.mxu0 0.0
        %1388 = vmatpush1.msra.mxu0 %v934
        %1389 = vmatprep.subr.mxu0 0.0
        %1390 = vmatpush1.msra.mxu0 %v939
        %1391 = vmatprep.subr.mxu0 0.0
        %1392 = vmatpush1.msra.mxu0 %v944
        %1393 = vmatprep.subr.mxu0 0.0
        %1394 = vmatpush1.msra.mxu0 %v949
        %1395 = vmatprep.subr.mxu0 0.0
        %1396 = vmatpush1.msra.mxu0 0.0
        %1397 = vmatprep.subr.mxu0 0.0
        %1398 = vmatpush1.msra.mxu0 0.0
        %1399 = vmatprep.subr.mxu0 0.0
        %1400 = vmatpush1.msra.mxu0 0.0
        %1401 = vmatprep.subr.mxu0 0.0
        %1402 = vmatpush1.msra.mxu0 0.0
        %1403 = vmatprep.subr.mxu0 0.0
        %1404 = vmatpush1.msra.mxu0 0.0
        %1405 = vmatprep.subr.mxu0 0.0
        %1406 = vmatpush1.msra.mxu0 0.0
        %1407 = vmatprep.subr.mxu0 0.0
        %1408 = vmatpush1.msra.mxu0 0.0
        %1409 = vmatprep.subr.mxu0 0.0
        %1410 = vmatpush1.msra.mxu0 0.0
        %1411 = vmatprep.subr.mxu0 0.0
        %1412 = vmatpush1.msra.mxu0 0.0
        %1413 = vmatprep.subr.mxu0 0.0
        %1414 = vmatpush1.msra.mxu0 0.0
        %1415 = vmatprep.subr.mxu0 0.0
        %1416 = vmatpush1.msra.mxu0 0.0
        %1417 = vmatprep.subr.mxu0 0.0
        %1418 = vmatpush1.msra.mxu0 0.0
        %1419 = vmatprep.subr.mxu0 0.0
        %1420 = vmatpush1.msra.mxu0 0.0
        %1421 = vmatprep.subr.mxu0 0.0
        %1422 = vmatpush1.msra.mxu0 0.0
        %1423 = vmatprep.subr.mxu0 0.0
        %1424 = vmatpush1.msra.mxu0 0.0
        %1425 = vmatprep.subr.mxu0 0.0
        %1426 = vmatpush1.msra.mxu0 0.0
        %1427 = vmatprep.subr.mxu0 0.0
        %1428 = vmatpush1.msra.mxu0 0.0
        %1429 = vmatprep.subr.mxu0 0.0
        %1430 = vmatpush1.msra.mxu0 0.0
        %1431 = vmatprep.subr.mxu0 0.0
        %1432 = vmatpush1.msra.mxu0 0.0
        %1433 = vmatprep.subr.mxu0 0.0
        %1434 = vmatpush1.msra.mxu0 0.0
        %1435 = vmatprep.subr.mxu0 0.0
        %1436 = vmatpush1.msra.mxu0 0.0
        %1437 = vmatprep.subr.mxu0 0.0
        %1438 = vmatpush1.msra.mxu0 0.0
        %1439 = vmatprep.subr.mxu0 0.0
        %1440 = vmatpush1.msra.mxu0 0.0
        %1441 = vmatprep.subr.mxu0 0.0
        %1442 = vmatpush1.msra.mxu0 0.0
        %1443 = vmatprep.mubr.f32.mxu0 0.0
        %1444 = vmatmul.mubr.f32.gmra.mrb[0].mxu0 %v1356
        %v1445 = vpop.f32.mrb[0].mxu0
        %v1446 = vadd.f32 0.0, %v1445
        %v1447 = vpop.f32.mrb[0].mxu0
        %1448 = vmatprep.mubr.f32.mxu0 0.0
        %1449 = vmatmul.mubr.f32.gmra.mrb[0].mxu0 %v1359
        %v1450 = vpop.f32.mrb[0].mxu0
        %v1451 = vadd.f32 0.0, %v1450
        %v1452 = vpop.f32.mrb[0].mxu0
        %1453 = vmatprep.mubr.f32.mxu0 0.0
        %1454 = vmatmul.mubr.f32.gmra.mrb[0].mxu0 %v1362
        %v1455 = vpop.f32.mrb[0].mxu0
        %v1456 = vadd.f32 0.0, %v1455
        %v1457 = vpop.f32.mrb[0].mxu0
        %1458 = vmatprep.mubr.f32.mxu0 0.0
        %1459 = vmatmul.mubr.f32.gmra.mrb[0].mxu0 %v1365
        %v1460 = vpop.f32.mrb[0].mxu0
        %v1461 = vadd.f32 0.0, %v1460
        %v1462 = vpop.f32.mrb[0].mxu0
        %1463 = vmatprep.mubr.f32.mxu0 0.0
        %1464 = vmatmul.mubr.f32.gmra.mrb[0].mxu0 %v1368
        %v1465 = vpop.f32.mrb[0].mxu0
        %v1466 = vadd.f32 0.0, %v1465
        %v1467 = vpop.f32.mrb[0].mxu0
        %1468 = vmatprep.mubr.f32.mxu0 0.0
        %1469 = vmatmul.mubr.f32.gmra.mrb[0].mxu0 %v1371
        %v1470 = vpop.f32.mrb[0].mxu0
        %v1471 = vadd.f32 0.0, %v1470
        %v1472 = vpop.f32.mrb[0].mxu0
        %1473 = vmatprep.mubr.f32.mxu0 0.0
        %1474 = vmatmul.mubr.f32.gmra.mrb[0].mxu0 %v1374
        %v1475 = vpop.f32.mrb[0].mxu0
        %v1476 = vadd.f32 0.0, %v1475
        %v1477 = vpop.f32.mrb[0].mxu0
        %1478 = vmatprep.mubr.f32.mxu0 0.0
        %1479 = vmatmul.mubr.f32.gmra.mrb[0].mxu0 %v1377
        %v1480 = vpop.f32.mrb[0].mxu0
        %v1481 = vadd.f32 0.0, %v1480
        %v1482 = vpop.f32.mrb[0].mxu0
        %1483 = vdwg.mxu0
        %v1484 = vadd.f32 %v1347, %v1446
        %v1485 = vadd.f32 %v1348, %v1451
        %v1486 = vadd.f32 %v1349, %v1456
        %v1487 = vadd.f32 %v1350, %v1461
        %v1488 = vadd.f32 %v1351, %v1466
        %v1489 = vadd.f32 %v1352, %v1471
        %v1490 = vadd.f32 %v1353, %v1476
        %v1491 = vadd.f32 %v1354, %v1481
        %1492 = vst.msk [vmem:[#allocation5] sm:$0xff] %vm706, %v1484
        %1493 = vst.msk [vmem:[#allocation5 + $0x8] sm:$0xff] %vm706, %v1485
        %1494 = vst.msk [vmem:[#allocation5 + $0x10] sm:$0xff] %vm706, %v1486
        %1495 = vst.msk [vmem:[#allocation5 + $0x18] sm:$0xff] %vm706, %v1487
        %1496 = vst.msk [vmem:[#allocation5 + $0x20] sm:$0xff] %vm706, %v1488
        %1497 = vst.msk [vmem:[#allocation5 + $0x28] sm:$0xff] %vm706, %v1489
        %1498 = vst.msk [vmem:[#allocation5 + $0x30] sm:$0xff] %vm706, %v1490
        %1499 = vst.msk [vmem:[#allocation5 + $0x38] sm:$0xff] %vm706, %v1491
        %1500 = vst.msk [vmem:[#allocation3] sm:$0xff] %vm1290, %v1146
        %1501 = vst.msk [vmem:[#allocation3 + $0x8] sm:$0xff] %vm1290, %v1147
        %1502 = vst.msk [vmem:[#allocation3 + $0x10] sm:$0xff] %vm1290, %v1148
        %1503 = vst.msk [vmem:[#allocation3 + $0x18] sm:$0xff] %vm1290, %v1149
        %1504 = vst.msk [vmem:[#allocation3 + $0x20] sm:$0xff] %vm1290, %v1150
        %1505 = vst.msk [vmem:[#allocation3 + $0x28] sm:$0xff] %vm1290, %v1151
        %1506 = vst.msk [vmem:[#allocation3 + $0x30] sm:$0xff] %vm1290, %v1152
        %1507 = vst.msk [vmem:[#allocation3 + $0x38] sm:$0xff] %vm1290, %v1153
        // Predicated region
        $region77: #{tpu_custom_call.1} parent=51 // pred_check
          %p1508 = pneg %p445
        $region78: #{tpu_custom_call.1} parent=51 // pred_check_branch
          %1510 = sbr.rel (%p1508) target = $region80
        $region79: #{tpu_custom_call.1} parent=51 // pred_region
          %v1511 = vld [vmem:[#allocation5] sm:$0xff]
          %v1512 = vld [vmem:[#allocation5 + $0x8] sm:$0xff]
          %v1513 = vld [vmem:[#allocation5 + $0x10] sm:$0xff]
          %v1514 = vld [vmem:[#allocation5 + $0x18] sm:$0xff]
          %v1515 = vld [vmem:[#allocation5 + $0x20] sm:$0xff]
          %v1516 = vld [vmem:[#allocation5 + $0x28] sm:$0xff]
          %v1517 = vld [vmem:[#allocation5 + $0x30] sm:$0xff]
          %v1518 = vld [vmem:[#allocation5 + $0x38] sm:$0xff]
          %v1519 = vld [vmem:[#allocation4] sm:$0xff]
          %v1520 = vld [vmem:[#allocation4 + $0x8] sm:$0xff]
          %v1521 = vld [vmem:[#allocation4 + $0x10] sm:$0xff]
          %v1522 = vld [vmem:[#allocation4 + $0x18] sm:$0xff]
          %v1523 = vld [vmem:[#allocation4 + $0x20] sm:$0xff]
          %v1524 = vld [vmem:[#allocation4 + $0x28] sm:$0xff]
          %v1525 = vld [vmem:[#allocation4 + $0x30] sm:$0xff]
          %v1526 = vld [vmem:[#allocation4 + $0x38] sm:$0xff]
          %v1527 = vrcp.pop %v1519
          %v1528 = vrcp.pop %v1520
          %v1529 = vrcp.pop %v1521
          %v1530 = vrcp.pop %v1522
          %v1531 = vrcp.pop %v1523
          %v1532 = vrcp.pop %v1524
          %v1533 = vrcp.pop %v1525
          %v1534 = vrcp.pop %v1526
          %1536 = vset.pattern.permute.xlu0 0
          %1537 = vperm.xlu0 %1536, %v1527
          %v1538 = vpop.permute.xlu0 %1537
          %1541 = vset.pattern.permute.xlu0 0
          %1542 = vperm.xlu0 %1541, %v1528
          %v1543 = vpop.permute.xlu0 %1542
          %1546 = vset.pattern.permute.xlu0 0
          %1547 = vperm.xlu0 %1546, %v1529
          %v1548 = vpop.permute.xlu0 %1547
          %1551 = vset.pattern.permute.xlu0 0
          %1552 = vperm.xlu0 %1551, %v1530
          %v1553 = vpop.permute.xlu0 %1552
          %1556 = vset.pattern.permute.xlu0 0
          %1557 = vperm.xlu0 %1556, %v1531
          %v1558 = vpop.permute.xlu0 %1557
          %1561 = vset.pattern.permute.xlu0 0
          %1562 = vperm.xlu0 %1561, %v1532
          %v1563 = vpop.permute.xlu0 %1562
          %1566 = vset.pattern.permute.xlu0 0
          %1567 = vperm.xlu0 %1566, %v1533
          %v1568 = vpop.permute.xlu0 %1567
          %1571 = vset.pattern.permute.xlu0 0
          %1572 = vperm.xlu0 %1571, %v1534
          %v1573 = vpop.permute.xlu0 %1572
          %v1575 = vmul.f32 %v1511, %v1538
          %v1576 = vmul.f32 %v1512, %v1543
          %v1577 = vmul.f32 %v1513, %v1548
          %v1578 = vmul.f32 %v1514, %v1553
          %v1579 = vmul.f32 %v1515, %v1558
          %v1580 = vmul.f32 %v1516, %v1563
          %v1581 = vmul.f32 %v1517, %v1568
          %v1582 = vmul.f32 %v1518, %v1573
          %1583 = vst.msk [vmem:[%s443] sm:$0xff] %vm706, %v1575
          %1584 = vst.msk [vmem:[%s443 + $0x8] sm:$0xff] %vm706, %v1576
          %1585 = vst.msk [vmem:[%s443 + $0x10] sm:$0xff] %vm706, %v1577
          %1586 = vst.msk [vmem:[%s443 + $0x18] sm:$0xff] %vm706, %v1578
          %1587 = vst.msk [vmem:[%s443 + $0x20] sm:$0xff] %vm706, %v1579
          %1588 = vst.msk [vmem:[%s443 + $0x28] sm:$0xff] %vm706, %v1580
          %1589 = vst.msk [vmem:[%s443 + $0x30] sm:$0xff] %vm706, %v1581
          %1590 = vst.msk [vmem:[%s443 + $0x38] sm:$0xff] %vm706, %v1582
        $region80: #{tpu_custom_call.1} parent=51 // pred_fallthru
          _
        %s1591 = smul.u32 8, %s32
        %p1592 = scmp.lt.s32.totalorder %s31, 1
        %s1593 = scalar_select %p1592, %s31, 1
        %p1594 = scmp.lt.s32.totalorder %s1591, 7
        %s1595 = scalar_select %p1594, %s1591, 7
        %s1596 = smul.addr %s1593, 8
        %s1597 = sadd.s32 %s1595, %s1596
        %s1598 = smul.addr %s1597, 8
        %s1599 = scalar_lea.vmem %s8, %s1598
        // Predicated region
        $region81: #{tpu_custom_call.1} parent=51 // pred_check
          %p1600 = pneg %p247
        $region82: #{tpu_custom_call.1} parent=51 // pred_check_branch
          %1602 = sbr.rel (%p1600) target = $region84
        $region83: #{tpu_custom_call.1} parent=51 // pred_region
          %s1603 = smul.u32 8, %s32
        $region84: #{tpu_custom_call.1} parent=51 // pred_fallthru
          _
      $region52: #{tpu_custom_call.1} parent=5 // pred_fallthru
        _
      %p1604 = scmp.le.s32.totalorder 2, %s21
      // Predicated region
      $region85: #{tpu_custom_call.1} parent=5 // pred_check
        %p1605 = pneg %p1604
      $region86: #{tpu_custom_call.1} parent=5 // pred_check_branch
        %1607 = sbr.rel (%p1605) target = $region88
      $region87: #{tpu_custom_call.1} parent=5 // pred_region
        %s1608 = ssub.s32 %s21, 2
        // Predicated region
        $region89: #{tpu_custom_call.1} parent=87 // pred_check
          %p1609 = pneg %p253
        $region90: #{tpu_custom_call.1} parent=87 // pred_check_branch
          %1611 = sbr.rel (%p1609) target = $region92
        $region91: #{tpu_custom_call.1} parent=87 // pred_region
          %s1612 = smul.u32 8, %s35
          %p1613 = scmp.lt.s32.totalorder %s34, 1
          %s1614 = scalar_select %p1613, %s34, 1
          %p1615 = scmp.lt.s32.totalorder %s1612, 7
          %s1616 = scalar_select %p1615, %s1612, 7
          %s1617 = smul.addr %s1614, 8
          %s1618 = sadd.s32 %s1616, %s1617
          %s1619 = smul.addr %s1618, 8
          %s1620 = scalar_lea.vmem %s8, %s1619
        $region92: #{tpu_custom_call.1} parent=87 // pred_fallthru
          _
      $region88: #{tpu_custom_call.1} parent=5 // pred_fallthru
        _
    $region6: #{tpu_custom_call.1} parent=1 // loop_footer
      %s25 = sadd.s32 1, %s21
    $region7: #{tpu_custom_call.1} parent=1 // loop_footer_branch
      %20 = sbr.rel target = $region3
    $region8: #{tpu_custom_call.1} parent=1 // loop_exit
      _
    %1621 = vsyncpa [#allocation7], 1
    %s1622 = scalar_lea.sflag [#allocation7], 1
    %1623 = vsyncpa %s1622, 1
    %1624 = vsyncpa [#allocation9], 1
    %s1625 = scalar_lea.sflag [#allocation9], 1
    %1626 = vsyncpa %s1625, 1
    %1627 = vsyncpa [#allocation12], 1

</llo_original>
